<compile_context>
chip_gen: v7x
topology: tpu7x:2x2x1
jax: 0.10.0
libtpu: 0.0.40
codegen_flags: <defaults>
</compile_context>

<pallas_src>
import jax
import jax.numpy as jnp
from jax.experimental import pallas as pl
from jax.experimental.pallas import tpu as pltpu


def _round_up(a, b):
    return (a + b - 1) // b * b


# ----------------------- with_conv=True : strided 3x3 conv -----------------------

def downsample_conv(x, weight, bias):
    """pad=(0,1,0,1) then Conv2d(C_in, C_out, kernel=3, stride=2, padding=0)."""
    N, C, H, W = x.shape
    Cout = weight.shape[0]
    OH = (H + 1 - 3) // 2 + 1
    OW = (W + 1 - 3) // 2 + 1
    PH, PW = OH + 1, OW + 1          # phase extents (cover tap shifts of 0/1)
    M = OH * PW                      # rows per image, incl. 1 junk column per row
    Coutp = _round_up(Cout, 128)     # lane-dense output columns
    R = _round_up(PH * PW + 1, 8)    # flattened phase rows (+slack for shifted taps)

    # ---- glue (XLA): NCHW -> NHWC, zero-pad bottom/right, split into the 4
    # stride-2 phases (total ~= input size instead of the 9x im2col blow-up).
    # TODO(synk): for very large images add spatial tiling of the per-image
    # phase slab (currently one image's phases must fit in VMEM per grid step).
    x_nhwc = jnp.transpose(x, (0, 2, 3, 1))
    x_pad = jnp.pad(x_nhwc, ((0, 0), (0, 1), (0, 1), (0, 0)))
    phases = []
    for r in range(2):
        for c in range(2):
            p = x_pad[:, r::2, c::2, :]
            p = jnp.pad(p, ((0, 0), (0, PH - p.shape[1]),
                            (0, PW - p.shape[2]), (0, 0)))
            phases.append(p)
    phases = jnp.stack(phases, axis=1)                        # (N, 4, PH, PW, C)
    phases = phases.reshape(N, 4, PH * PW, C)
    phases = jnp.pad(phases, ((0, 0), (0, 0), (0, R - PH * PW), (0, 0)))

    # weight (Cout, Cin, 3, 3) -> (9, Cin, Coutp) bf16 (MXU-native), zero-padded
    # columns; bias -> (1, Coutp) f32 (added once in the finalize step).
    w_mat = jnp.transpose(weight, (2, 3, 1, 0)).reshape(9, C, Cout)
    w_mat = jnp.pad(w_mat, ((0, 0), (0, 0), (0, Coutp - Cout))).astype(jnp.bfloat16)
    b_mat = jnp.pad(bias.astype(jnp.float32), (0, Coutp - Cout)).reshape(1, Coutp)

    def kernel(ph_ref, w_ref, b_ref, o_ref, acc_ref):
        # ph_ref: (1, 4, R, C) f32   w_ref: (9, C, Coutp) bf16 (stays resident)
        # b_ref : (1, Coutp) f32     o_ref: (1, M, Coutp)  acc_ref: (M, Coutp) f32
        acc_ref[...] = jnp.zeros_like(acc_ref)
        for kh in range(3):                       # 9 taps, unrolled in-kernel
            for kw in range(3):
                pid = (kh % 2) * 2 + (kw % 2)     # which stride-2 phase
                start = (kh // 2) * PW + (kw // 2)  # static row shift in flat layout
                lhs = ph_ref[0, pid, start:start + M, :].astype(jnp.bfloat16)
                acc_ref[...] += jnp.dot(lhs, w_ref[3 * kh + kw],
                                        preferred_element_type=jnp.float32)
        # bias added once, only at finalize
        o_ref[0] = (acc_ref[...] + b_ref[...]).astype(o_ref.dtype)

    out = pl.pallas_call(
        kernel,
        out_shape=jax.ShapeDtypeStruct((N, M, Coutp), x.dtype),
        grid=(N,),
        in_specs=[
            pl.BlockSpec((1, 4, R, C), lambda n: (n, 0, 0, 0)),
            pl.BlockSpec((9, C, Coutp), lambda n: (0, 0, 0)),   # resident weights
            pl.BlockSpec((1, Coutp), lambda n: (0, 0)),         # resident bias
        ],
        out_specs=pl.BlockSpec((1, M, Coutp), lambda n: (n, 0, 0)),
        scratch_shapes=[pltpu.VMEM((M, Coutp), jnp.float32)],
        compiler_params=pltpu.CompilerParams(
            dimension_semantics=("parallel",)),                 # megacore over N
    )(phases, w_mat, b_mat)

    # drop padded output channels and the junk (ow == OW) column, back to NCHW
    out = out[:, :, :Cout].reshape(N, OH, PW, Cout)[:, :, :OW, :]
    return jnp.transpose(out, (0, 3, 1, 2))


# ------------------------ with_conv=False : 2x2 avg pool ------------------------

def _avgpool_kernel(x_ref, o_ref):
    # x_ref: (4, br, LANES) -- the four taps of every 2x2 window, flattened
    s = x_ref[0] + x_ref[1] + x_ref[2] + x_ref[3]
    o_ref[...] = (s * 0.25).astype(o_ref.dtype)


def downsample_avgpool(x):
    """avg_pool2d(kernel=2, stride=2)."""
    N, C, H, W = x.shape
    OH, OW = H // 2, W // 2   # TODO(synk): odd H/W would need PyTorch-style cropping

    # glue (XLA): 4 taps via cheap stride-2 slices, flattened to a lane-dense slab
    taps = jnp.stack([x[:, :, r:2 * OH:2, c:2 * OW:2]
                      for r in range(2) for c in range(2)], axis=0)
    taps = taps.reshape(4, -1)
    T = taps.shape[1]                     # = N*C*OH*OW
    LANES = 512                           # multiple of 128 -> unmasked stores
    BR = 256                              # row tile (2 MiB/step of input DMA)
    rows = pl.cdiv(T, LANES)
    if rows >= BR:
        rows_p, br = _round_up(rows, BR), BR
    else:
        rows_p, br = rows, rows
    taps = jnp.pad(taps, ((0, 0), (0, rows_p * LANES - T)))
    taps = taps.reshape(4, rows_p, LANES)

    out = pl.pallas_call(
        _avgpool_kernel,
        out_shape=jax.ShapeDtypeStruct((rows_p, LANES), x.dtype),
        grid=(rows_p // br,),
        in_specs=[pl.BlockSpec((4, br, LANES), lambda i: (0, i, 0))],
        out_specs=pl.BlockSpec((br, LANES), lambda i: (i, 0)),
        compiler_params=pltpu.CompilerParams(
            dimension_semantics=("parallel",)),
    )(taps)

    return out.reshape(-1)[:T].reshape(N, C, OH, OW)


def downsample(x, weight=None, bias=None, *, with_conv=True):
    if with_conv:
        return downsample_conv(x, weight, bias)
    return downsample_avgpool(x)


# ----------------------------------- main -----------------------------------

if __name__ == "__main__":
    key = jax.random.PRNGKey(0)
    kx, kw, kb = jax.random.split(key, 3)

    N, C, H, W = 2, 4, 16, 16
    x = jax.random.normal(kx, (N, C, H, W), dtype=jnp.float32)
    # deterministic synthetic Conv2d(in=C, out=C, k=3) parameters
    weight = jax.random.normal(kw, (C, C, 3, 3), dtype=jnp.float32) * 0.1
    bias = jax.random.normal(kb, (C,), dtype=jnp.float32) * 0.1

    y_conv = jax.block_until_ready(downsample(x, weight, bias, with_conv=True))
    y_pool = jax.block_until_ready(downsample(x, with_conv=False))

    # references (plain XLA).  The conv kernel feeds the MXU bf16 operands, so
    # the reference uses identically bf16-rounded operands (products are then
    # exact in f32; only the summation order differs).
    x_q = x.astype(jnp.bfloat16).astype(jnp.float32)
    w_q = weight.astype(jnp.bfloat16).astype(jnp.float32)
    x_pad = jnp.pad(x_q, ((0, 0), (0, 0), (0, 1), (0, 1)))
    ref_conv = jax.lax.conv_general_dilated(
        x_pad, w_q, window_strides=(2, 2), padding="VALID",
        dimension_numbers=("NCHW", "OIHW", "NCHW")) + bias.reshape(1, C, 1, 1)
    ref_pool = x.reshape(N, C, H // 2, 2, W // 2, 2).mean(axis=(3, 5))

    assert y_conv.shape == (N, C, 8, 8) and y_pool.shape == (N, C, 8, 8)
    assert jnp.allclose(y_conv, ref_conv, atol=1e-4, rtol=1e-4)
    assert jnp.allclose(y_pool, ref_pool, atol=1e-5, rtol=1e-5)

    print("KERNEL_OK")
</pallas_src>

<mosaic_0001>
module attributes {stable_mosaic.version = 11 : i64} {
  func.func @kernel(%arg0: i32, %arg1: memref<1x4x88x4xf32, #tpu.memory_space<vmem>>, %arg2: memref<9x4x128xbf16, #tpu.memory_space<vmem>>, %arg3: memref<1x128xf32, #tpu.memory_space<vmem>>, %arg4: memref<1x72x128xf32, #tpu.memory_space<vmem>>, %arg5: memref<72x128xf32, #tpu.memory_space<vmem>>) attributes {dimension_semantics = [#tpu.dimension_semantics<parallel>], iteration_bounds = array<i64: 2>, scalar_prefetch = 0 : i64, scratch_operands = 1 : i64, tpu.core_type = #tpu.core_type<tc>, window_params = [{transform_indices = @transform_0, window_bounds = array<i64: 1, 4, 88, 4>}, {pipeline_mode = #tpu.pipeline_mode<synchronous>, transform_indices = @transform_1, window_bounds = array<i64: 9, 4, 128>}, {pipeline_mode = #tpu.pipeline_mode<synchronous>, transform_indices = @transform_2, window_bounds = array<i64: 1, 128>}, {transform_indices = @transform_3, window_bounds = array<i64: 1, 72, 128>}]} {
    %cst = arith.constant 0.000000e+00 : f32
    %0 = vector.broadcast %cst : f32 to vector<72x128xf32>
    %c0 = arith.constant 0 : index
    %c0_0 = arith.constant 0 : index
    %1 = vector.load %arg5[%c0, %c0_0] : memref<72x128xf32, #tpu.memory_space<vmem>>, vector<72x128xf32>
    tpu.vector_store %arg5[%c0, %c0_0], %0 {strides = array<i32>} : memref<72x128xf32, #tpu.memory_space<vmem>>, vector<72x128xf32>,
    %c0_1 = arith.constant 0 : index
    %c0_2 = arith.constant 0 : index
    %c0_3 = arith.constant 0 : index
    %c0_4 = arith.constant 0 : index
    %2 = vector.load %arg1[%c0_1, %c0_2, %c0_3, %c0_4] : memref<1x4x88x4xf32, #tpu.memory_space<vmem>>, vector<1x1x72x4xf32>
    %3 = vector.shape_cast %2 : vector<1x1x72x4xf32> to vector<72x4xf32>
    %4 = arith.truncf %3 : vector<72x4xf32> to vector<72x4xbf16>
    %c0_5 = arith.constant 0 : index
    %c0_6 = arith.constant 0 : index
    %5 = vector.load %arg5[%c0_5, %c0_6] : memref<72x128xf32, #tpu.memory_space<vmem>>, vector<72x128xf32>
    %c0_7 = arith.constant 0 : index
    %c0_8 = arith.constant 0 : index
    %c0_9 = arith.constant 0 : index
    %6 = vector.load %arg2[%c0_7, %c0_8, %c0_9] : memref<9x4x128xbf16, #tpu.memory_space<vmem>>, vector<1x4x128xbf16>
    %7 = vector.shape_cast %6 : vector<1x4x128xbf16> to vector<4x128xbf16>
    %cst_10 = arith.constant dense<0.000000e+00> : vector<72x128xf32>
    %8 = tpu.matmul %4, %7, %cst_10 {dimension_numbers = #tpu.dot_dimension_numbers<[1], [0], [0], [1], [0, 0, 1, 1], [], []>} : vector<72x4xbf16>, vector<4x128xbf16>, vector<72x128xf32> -> vector<72x128xf32>
    %9 = arith.addf %5, %8 : vector<72x128xf32>
    %c0_11 = arith.constant 0 : index
    %c0_12 = arith.constant 0 : index
    %10 = vector.load %arg5[%c0_11, %c0_12] : memref<72x128xf32, #tpu.memory_space<vmem>>, vector<72x128xf32>
    tpu.vector_store %arg5[%c0_11, %c0_12], %9 {strides = array<i32>} : memref<72x128xf32, #tpu.memory_space<vmem>>, vector<72x128xf32>,
    %c0_13 = arith.constant 0 : index
    %c1 = arith.constant 1 : index
    %c0_14 = arith.constant 0 : index
    %c0_15 = arith.constant 0 : index
    %11 = vector.load %arg1[%c0_13, %c1, %c0_14, %c0_15] : memref<1x4x88x4xf32, #tpu.memory_space<vmem>>, vector<1x1x72x4xf32>
    %12 = vector.shape_cast %11 : vector<1x1x72x4xf32> to vector<72x4xf32>
    %13 = arith.truncf %12 : vector<72x4xf32> to vector<72x4xbf16>
    %c0_16 = arith.constant 0 : index
    %c0_17 = arith.constant 0 : index
    %14 = vector.load %arg5[%c0_16, %c0_17] : memref<72x128xf32, #tpu.memory_space<vmem>>, vector<72x128xf32>
    %c1_18 = arith.constant 1 : index
    %c0_19 = arith.constant 0 : index
    %c0_20 = arith.constant 0 : index
    %15 = vector.load %arg2[%c1_18, %c0_19, %c0_20] : memref<9x4x128xbf16, #tpu.memory_space<vmem>>, vector<1x4x128xbf16>
    %16 = vector.shape_cast %15 : vector<1x4x128xbf16> to vector<4x128xbf16>
    %cst_21 = arith.constant dense<0.000000e+00> : vector<72x128xf32>
    %17 = tpu.matmul %13, %16, %cst_21 {dimension_numbers = #tpu.dot_dimension_numbers<[1], [0], [0], [1], [0, 0, 1, 1], [], []>} : vector<72x4xbf16>, vector<4x128xbf16>, vector<72x128xf32> -> vector<72x128xf32>
    %18 = arith.addf %14, %17 : vector<72x128xf32>
    %c0_22 = arith.constant 0 : index
    %c0_23 = arith.constant 0 : index
    %19 = vector.load %arg5[%c0_22, %c0_23] : memref<72x128xf32, #tpu.memory_space<vmem>>, vector<72x128xf32>
    tpu.vector_store %arg5[%c0_22, %c0_23], %18 {strides = array<i32>} : memref<72x128xf32, #tpu.memory_space<vmem>>, vector<72x128xf32>,
    %c0_24 = arith.constant 0 : index
    %c0_25 = arith.constant 0 : index
    %c1_26 = arith.constant 1 : index
    %c0_27 = arith.constant 0 : index
    %20 = vector.load %arg1[%c0_24, %c0_25, %c1_26, %c0_27] : memref<1x4x88x4xf32, #tpu.memory_space<vmem>>, vector<1x1x72x4xf32>
    %21 = vector.shape_cast %20 : vector<1x1x72x4xf32> to vector<72x4xf32>
    %22 = arith.truncf %21 : vector<72x4xf32> to vector<72x4xbf16>
    %c0_28 = arith.constant 0 : index
    %c0_29 = arith.constant 0 : index
    %23 = vector.load %arg5[%c0_28, %c0_29] : memref<72x128xf32, #tpu.memory_space<vmem>>, vector<72x128xf32>
    %c2 = arith.constant 2 : index
    %c0_30 = arith.constant 0 : index
    %c0_31 = arith.constant 0 : index
    %24 = vector.load %arg2[%c2, %c0_30, %c0_31] : memref<9x4x128xbf16, #tpu.memory_space<vmem>>, vector<1x4x128xbf16>
    %25 = vector.shape_cast %24 : vector<1x4x128xbf16> to vector<4x128xbf16>
    %cst_32 = arith.constant dense<0.000000e+00> : vector<72x128xf32>
    %26 = tpu.matmul %22, %25, %cst_32 {dimension_numbers = #tpu.dot_dimension_numbers<[1], [0], [0], [1], [0, 0, 1, 1], [], []>} : vector<72x4xbf16>, vector<4x128xbf16>, vector<72x128xf32> -> vector<72x128xf32>
    %27 = arith.addf %23, %26 : vector<72x128xf32>
    %c0_33 = arith.constant 0 : index
    %c0_34 = arith.constant 0 : index
    %28 = vector.load %arg5[%c0_33, %c0_34] : memref<72x128xf32, #tpu.memory_space<vmem>>, vector<72x128xf32>
    tpu.vector_store %arg5[%c0_33, %c0_34], %27 {strides = array<i32>} : memref<72x128xf32, #tpu.memory_space<vmem>>, vector<72x128xf32>,
    %c0_35 = arith.constant 0 : index
    %c2_36 = arith.constant 2 : index
    %c0_37 = arith.constant 0 : index
    %c0_38 = arith.constant 0 : index
    %29 = vector.load %arg1[%c0_35, %c2_36, %c0_37, %c0_38] : memref<1x4x88x4xf32, #tpu.memory_space<vmem>>, vector<1x1x72x4xf32>
    %30 = vector.shape_cast %29 : vector<1x1x72x4xf32> to vector<72x4xf32>
    %31 = arith.truncf %30 : vector<72x4xf32> to vector<72x4xbf16>
    %c0_39 = arith.constant 0 : index
    %c0_40 = arith.constant 0 : index
    %32 = vector.load %arg5[%c0_39, %c0_40] : memref<72x128xf32, #tpu.memory_space<vmem>>, vector<72x128xf32>
    %c3 = arith.constant 3 : index
    %c0_41 = arith.constant 0 : index
    %c0_42 = arith.constant 0 : index
    %33 = vector.load %arg2[%c3, %c0_41, %c0_42] : memref<9x4x128xbf16, #tpu.memory_space<vmem>>, vector<1x4x128xbf16>
    %34 = vector.shape_cast %33 : vector<1x4x128xbf16> to vector<4x128xbf16>
    %cst_43 = arith.constant dense<0.000000e+00> : vector<72x128xf32>
    %35 = tpu.matmul %31, %34, %cst_43 {dimension_numbers = #tpu.dot_dimension_numbers<[1], [0], [0], [1], [0, 0, 1, 1], [], []>} : vector<72x4xbf16>, vector<4x128xbf16>, vector<72x128xf32> -> vector<72x128xf32>
    %36 = arith.addf %32, %35 : vector<72x128xf32>
    %c0_44 = arith.constant 0 : index
    %c0_45 = arith.constant 0 : index
    %37 = vector.load %arg5[%c0_44, %c0_45] : memref<72x128xf32, #tpu.memory_space<vmem>>, vector<72x128xf32>
    tpu.vector_store %arg5[%c0_44, %c0_45], %36 {strides = array<i32>} : memref<72x128xf32, #tpu.memory_space<vmem>>, vector<72x128xf32>,
    %c0_46 = arith.constant 0 : index
    %c3_47 = arith.constant 3 : index
    %c0_48 = arith.constant 0 : index
    %c0_49 = arith.constant 0 : index
    %38 = vector.load %arg1[%c0_46, %c3_47, %c0_48, %c0_49] : memref<1x4x88x4xf32, #tpu.memory_space<vmem>>, vector<1x1x72x4xf32>
    %39 = vector.shape_cast %38 : vector<1x1x72x4xf32> to vector<72x4xf32>
    %40 = arith.truncf %39 : vector<72x4xf32> to vector<72x4xbf16>
    %c0_50 = arith.constant 0 : index
    %c0_51 = arith.constant 0 : index
    %41 = vector.load %arg5[%c0_50, %c0_51] : memref<72x128xf32, #tpu.memory_space<vmem>>, vector<72x128xf32>
    %c4 = arith.constant 4 : index
    %c0_52 = arith.constant 0 : index
    %c0_53 = arith.constant 0 : index
    %42 = vector.load %arg2[%c4, %c0_52, %c0_53] : memref<9x4x128xbf16, #tpu.memory_space<vmem>>, vector<1x4x128xbf16>
    %43 = vector.shape_cast %42 : vector<1x4x128xbf16> to vector<4x128xbf16>
    %cst_54 = arith.constant dense<0.000000e+00> : vector<72x128xf32>
    %44 = tpu.matmul %40, %43, %cst_54 {dimension_numbers = #tpu.dot_dimension_numbers<[1], [0], [0], [1], [0, 0, 1, 1], [], []>} : vector<72x4xbf16>, vector<4x128xbf16>, vector<72x128xf32> -> vector<72x128xf32>
    %45 = arith.addf %41, %44 : vector<72x128xf32>
    %c0_55 = arith.constant 0 : index
    %c0_56 = arith.constant 0 : index
    %46 = vector.load %arg5[%c0_55, %c0_56] : memref<72x128xf32, #tpu.memory_space<vmem>>, vector<72x128xf32>
    tpu.vector_store %arg5[%c0_55, %c0_56], %45 {strides = array<i32>} : memref<72x128xf32, #tpu.memory_space<vmem>>, vector<72x128xf32>,
    %c0_57 = arith.constant 0 : index
    %c2_58 = arith.constant 2 : index
    %c1_59 = arith.constant 1 : index
    %c0_60 = arith.constant 0 : index
    %47 = vector.load %arg1[%c0_57, %c2_58, %c1_59, %c0_60] : memref<1x4x88x4xf32, #tpu.memory_space<vmem>>, vector<1x1x72x4xf32>
    %48 = vector.shape_cast %47 : vector<1x1x72x4xf32> to vector<72x4xf32>
    %49 = arith.truncf %48 : vector<72x4xf32> to vector<72x4xbf16>
    %c0_61 = arith.constant 0 : index
    %c0_62 = arith.constant 0 : index
    %50 = vector.load %arg5[%c0_61, %c0_62] : memref<72x128xf32, #tpu.memory_space<vmem>>, vector<72x128xf32>
    %c5 = arith.constant 5 : index
    %c0_63 = arith.constant 0 : index
    %c0_64 = arith.constant 0 : index
    %51 = vector.load %arg2[%c5, %c0_63, %c0_64] : memref<9x4x128xbf16, #tpu.memory_space<vmem>>, vector<1x4x128xbf16>
    %52 = vector.shape_cast %51 : vector<1x4x128xbf16> to vector<4x128xbf16>
    %cst_65 = arith.constant dense<0.000000e+00> : vector<72x128xf32>
    %53 = tpu.matmul %49, %52, %cst_65 {dimension_numbers = #tpu.dot_dimension_numbers<[1], [0], [0], [1], [0, 0, 1, 1], [], []>} : vector<72x4xbf16>, vector<4x128xbf16>, vector<72x128xf32> -> vector<72x128xf32>
    %54 = arith.addf %50, %53 : vector<72x128xf32>
    %c0_66 = arith.constant 0 : index
    %c0_67 = arith.constant 0 : index
    %55 = vector.load %arg5[%c0_66, %c0_67] : memref<72x128xf32, #tpu.memory_space<vmem>>, vector<72x128xf32>
    tpu.vector_store %arg5[%c0_66, %c0_67], %54 {strides = array<i32>} : memref<72x128xf32, #tpu.memory_space<vmem>>, vector<72x128xf32>,
    %c0_68 = arith.constant 0 : index
    %c0_69 = arith.constant 0 : index
    %c9 = arith.constant 9 : index
    %c0_70 = arith.constant 0 : index
    %56 = vector.load %arg1[%c0_68, %c0_69, %c9, %c0_70] : memref<1x4x88x4xf32, #tpu.memory_space<vmem>>, vector<1x1x72x4xf32>
    %57 = vector.shape_cast %56 : vector<1x1x72x4xf32> to vector<72x4xf32>
    %58 = arith.truncf %57 : vector<72x4xf32> to vector<72x4xbf16>
    %c0_71 = arith.constant 0 : index
    %c0_72 = arith.constant 0 : index
    %59 = vector.load %arg5[%c0_71, %c0_72] : memref<72x128xf32, #tpu.memory_space<vmem>>, vector<72x128xf32>
    %c6 = arith.constant 6 : index
    %c0_73 = arith.constant 0 : index
    %c0_74 = arith.constant 0 : index
    %60 = vector.load %arg2[%c6, %c0_73, %c0_74] : memref<9x4x128xbf16, #tpu.memory_space<vmem>>, vector<1x4x128xbf16>
    %61 = vector.shape_cast %60 : vector<1x4x128xbf16> to vector<4x128xbf16>
    %cst_75 = arith.constant dense<0.000000e+00> : vector<72x128xf32>
    %62 = tpu.matmul %58, %61, %cst_75 {dimension_numbers = #tpu.dot_dimension_numbers<[1], [0], [0], [1], [0, 0, 1, 1], [], []>} : vector<72x4xbf16>, vector<4x128xbf16>, vector<72x128xf32> -> vector<72x128xf32>
    %63 = arith.addf %59, %62 : vector<72x128xf32>
    %c0_76 = arith.constant 0 : index
    %c0_77 = arith.constant 0 : index
    %64 = vector.load %arg5[%c0_76, %c0_77] : memref<72x128xf32, #tpu.memory_space<vmem>>, vector<72x128xf32>
    tpu.vector_store %arg5[%c0_76, %c0_77], %63 {strides = array<i32>} : memref<72x128xf32, #tpu.memory_space<vmem>>, vector<72x128xf32>,
    %c0_78 = arith.constant 0 : index
    %c1_79 = arith.constant 1 : index
    %c9_80 = arith.constant 9 : index
    %c0_81 = arith.constant 0 : index
    %65 = vector.load %arg1[%c0_78, %c1_79, %c9_80, %c0_81] : memref<1x4x88x4xf32, #tpu.memory_space<vmem>>, vector<1x1x72x4xf32>
    %66 = vector.shape_cast %65 : vector<1x1x72x4xf32> to vector<72x4xf32>
    %67 = arith.truncf %66 : vector<72x4xf32> to vector<72x4xbf16>
    %c0_82 = arith.constant 0 : index
    %c0_83 = arith.constant 0 : index
    %68 = vector.load %arg5[%c0_82, %c0_83] : memref<72x128xf32, #tpu.memory_space<vmem>>, vector<72x128xf32>
    %c7 = arith.constant 7 : index
    %c0_84 = arith.constant 0 : index
    %c0_85 = arith.constant 0 : index
    %69 = vector.load %arg2[%c7, %c0_84, %c0_85] : memref<9x4x128xbf16, #tpu.memory_space<vmem>>, vector<1x4x128xbf16>
    %70 = vector.shape_cast %69 : vector<1x4x128xbf16> to vector<4x128xbf16>
    %cst_86 = arith.constant dense<0.000000e+00> : vector<72x128xf32>
    %71 = tpu.matmul %67, %70, %cst_86 {dimension_numbers = #tpu.dot_dimension_numbers<[1], [0], [0], [1], [0, 0, 1, 1], [], []>} : vector<72x4xbf16>, vector<4x128xbf16>, vector<72x128xf32> -> vector<72x128xf32>
    %72 = arith.addf %68, %71 : vector<72x128xf32>
    %c0_87 = arith.constant 0 : index
    %c0_88 = arith.constant 0 : index
    %73 = vector.load %arg5[%c0_87, %c0_88] : memref<72x128xf32, #tpu.memory_space<vmem>>, vector<72x128xf32>
    tpu.vector_store %arg5[%c0_87, %c0_88], %72 {strides = array<i32>} : memref<72x128xf32, #tpu.memory_space<vmem>>, vector<72x128xf32>,
    %c0_89 = arith.constant 0 : index
    %c0_90 = arith.constant 0 : index
    %c10 = arith.constant 10 : index
    %c0_91 = arith.constant 0 : index
    %74 = vector.load %arg1[%c0_89, %c0_90, %c10, %c0_91] : memref<1x4x88x4xf32, #tpu.memory_space<vmem>>, vector<1x1x72x4xf32>
    %75 = vector.shape_cast %74 : vector<1x1x72x4xf32> to vector<72x4xf32>
    %76 = arith.truncf %75 : vector<72x4xf32> to vector<72x4xbf16>
    %c0_92 = arith.constant 0 : index
    %c0_93 = arith.constant 0 : index
    %77 = vector.load %arg5[%c0_92, %c0_93] : memref<72x128xf32, #tpu.memory_space<vmem>>, vector<72x128xf32>
    %c8 = arith.constant 8 : index
    %c0_94 = arith.constant 0 : index
    %c0_95 = arith.constant 0 : index
    %78 = vector.load %arg2[%c8, %c0_94, %c0_95] : memref<9x4x128xbf16, #tpu.memory_space<vmem>>, vector<1x4x128xbf16>
    %79 = vector.shape_cast %78 : vector<1x4x128xbf16> to vector<4x128xbf16>
    %cst_96 = arith.constant dense<0.000000e+00> : vector<72x128xf32>
    %80 = tpu.matmul %76, %79, %cst_96 {dimension_numbers = #tpu.dot_dimension_numbers<[1], [0], [0], [1], [0, 0, 1, 1], [], []>} : vector<72x4xbf16>, vector<4x128xbf16>, vector<72x128xf32> -> vector<72x128xf32>
    %81 = arith.addf %77, %80 : vector<72x128xf32>
    %c0_97 = arith.constant 0 : index
    %c0_98 = arith.constant 0 : index
    %82 = vector.load %arg5[%c0_97, %c0_98] : memref<72x128xf32, #tpu.memory_space<vmem>>, vector<72x128xf32>
    tpu.vector_store %arg5[%c0_97, %c0_98], %81 {strides = array<i32>} : memref<72x128xf32, #tpu.memory_space<vmem>>, vector<72x128xf32>,
    %c0_99 = arith.constant 0 : index
    %c0_100 = arith.constant 0 : index
    %83 = vector.load %arg5[%c0_99, %c0_100] : memref<72x128xf32, #tpu.memory_space<vmem>>, vector<72x128xf32>
    %c0_101 = arith.constant 0 : index
    %c0_102 = arith.constant 0 : index
    %84 = vector.load %arg3[%c0_101, %c0_102] : memref<1x128xf32, #tpu.memory_space<vmem>>, vector<1x128xf32>
    %85 = vector.broadcast %84 : vector<1x128xf32> to vector<72x128xf32>
    %86 = arith.addf %83, %85 : vector<72x128xf32>
    %c0_103 = arith.constant 0 : index
    %c0_104 = arith.constant 0 : index
    %c0_105 = arith.constant 0 : index
    %87 = vector.load %arg4[%c0_103, %c0_104, %c0_105] : memref<1x72x128xf32, #tpu.memory_space<vmem>>, vector<1x72x128xf32>
    %88 = vector.shape_cast %87 : vector<1x72x128xf32> to vector<72x128xf32>
    %89 = vector.shape_cast %86 : vector<72x128xf32> to vector<1x72x128xf32>
    tpu.vector_store %arg4[%c0_103, %c0_104, %c0_105], %89 {strides = array<i32>} : memref<1x72x128xf32, #tpu.memory_space<vmem>>, vector<1x72x128xf32>,
    return
  }
  func.func @transform_0(%arg0: i32) -> (i32, i32, i32, i32) {
    %c0_i32 = arith.constant 0 : i32
    %c0_i32_0 = arith.constant 0 : i32
    %c0_i32_1 = arith.constant 0 : i32
    %c0_i32_2 = arith.constant 0 : i32
    return %arg0, %c0_i32, %c0_i32_0, %c0_i32_1 : i32, i32, i32, i32
  }
  func.func @transform_1(%arg0: i32) -> (i32, i32, i32) {
    %c0_i32 = arith.constant 0 : i32
    %c0_i32_0 = arith.constant 0 : i32
    %c0_i32_1 = arith.constant 0 : i32
    %c0_i32_2 = arith.constant 0 : i32
    return %c0_i32, %c0_i32_0, %c0_i32_1 : i32, i32, i32
  }
  func.func @transform_2(%arg0: i32) -> (i32, i32) {
    %c0_i32 = arith.constant 0 : i32
    %c0_i32_0 = arith.constant 0 : i32
    %c0_i32_1 = arith.constant 0 : i32
    return %c0_i32, %c0_i32_0 : i32, i32
  }
  func.func @transform_3(%arg0: i32) -> (i32, i32, i32) {
    %c0_i32 = arith.constant 0 : i32
    %c0_i32_0 = arith.constant 0 : i32
    %c0_i32_1 = arith.constant 0 : i32
    return %arg0, %c0_i32, %c0_i32_0 : i32, i32, i32
  }
}

</mosaic_0001>

<llo_original>
// kernel: tpu_custom_call.1
$region0: #{tpu_custom_call.1}
  #allocation0 [shape = 'u32[]', space=smem, size = 0x4, offset = 0x4, fixed_abs, tag = 'smem constant byte address 0x4 - core index']
  #allocation1 [shape = 'u32[144,128]{1,0:T(1,128)}', space=vmem, size = 0x12000, scoped, tag = 'internal scratch']
  #allocation2 [shape = 'f32[72,128]{1,0:T(8,128)}', space=vmem, size = 0x9000, scoped, tag = 'scratch operand']
  %s0 = inlined_call_operand.vmem [shape: f32[2,4,88,4], index: 0, kind: input, shape index: {}]
  %s1 = inlined_call_operand.vmem [shape: bf16[9,4,128], index: 1, kind: input, shape index: {}]
  %s2 = inlined_call_operand.vmem [shape: f32[1,128], index: 2, kind: input, shape index: {}]
  %s3 = inlined_call_operand.hbm [shape: f32[2,72,128], index: 3, kind: output, shape index: {}]
  %s4 = sld [smem:[#allocation0]]
  $region45: #{tpu_custom_call.1} parent=0
    _
  %s6 = ssub.s32 1, %s4
  %s7 = scalar_select 0, %s6, %s4
  $region1: #{tpu_custom_call.1} parent=0
    #allocation3 [shape = 'u8[73728]{0}', space=vmem, size = 0x12000, scoped, tag = 'output window, operand 0']
    #allocation4 [shape = 's32[2]{0}', space=sflag, size = 0x8, scoped, tag = 'scoped memory for tpu_custom_call.1']
    %8 = vsyncpa [#allocation4], 0
    %s9 = scalar_lea.sflag [#allocation4], 1
    %10 = vsyncpa %s9, 0
    loop: start=0, step=1, limit=4
    $region2: #{tpu_custom_call.1} parent=1 // loop_pre_header
      _
    $region3: #{tpu_custom_call.1} parent=1 // loop_header
      %s12 = sphi 0, %s16
      %p13 = scmp.ge.s32.totalorder %s12, 4
      %s22 = sphi 0, %s24
      %s25 = sphi 0, %s22
      %s26 = sphi 0, %s25
      %s42 = sphi 0, %s26
      %s46 = sphi 0, %s46
      %s48 = sphi 0, %s46
      %s49 = sphi 0, %s48
      %s63 = sphi 0, %s49
      %s67 = sphi 0, %s67
      %s69 = sphi 0, %s67
      %s70 = sphi 0, %s69
      %s84 = sphi 0, %s70
      %s90 = sphi 0, %s92
      %s93 = sphi 0, %s90
      %s94 = sphi 0, %s93
      %s110 = sphi 0, %s94
    $region4: #{tpu_custom_call.1} parent=1 // loop_header_branch
      %15 = sbr.rel (%p13) target = $region8
    $region5: #{tpu_custom_call.1} parent=1 // loop_body
      %s17 = ssub.s32 %s12, 1
      %s18 = ssub.s32 %s12, 2
      %s19 = sadd.s32 %s12, 1
      %s20 = ssub.s32 %s12, %s19
      %p21 = scmp.eq.s32.totalorder %s20, 0
      %s23 = sadd.s32 %s22, 1
      %s24 = scalar_select %p21, %s22, %s23
      %p27 = pneg %p21
      %p28 = scmp.eq.s32.totalorder %s12, 1
      %p29 = por %p27, %p28
      %p30 = scmp.ne.s32.totalorder %s22, %s25
      %p31 = scmp.eq.s32.totalorder %s12, 0
      %p32 = por %p30, %p31
      %p33 = scmp.ne.s32.totalorder %s22, %s25
      %p34 = scmp.eq.s32.totalorder %s17, 1
      %p35 = por %p33, %p34
      %p36 = scmp.ne.s32.totalorder %s25, %s26
      %p37 = scmp.eq.s32.totalorder %s17, 0
      %p38 = por %p36, %p37
      %p39 = scmp.ne.s32.totalorder %s25, %s26
      %p40 = scmp.eq.s32.totalorder %s18, 1
      %p41 = por %p39, %p40
      %p43 = scmp.ne.s32.totalorder %s26, %s42
      %p44 = scmp.eq.s32.totalorder %s18, 0
      %p45 = por %p43, %p44
      %s47 = sadd.s32 %s46, 1
      %p50 = scmp.eq.s32.totalorder %s12, 1
      %p51 = scmp.ne.s32.totalorder %s46, %s48
      %p52 = scmp.eq.s32.totalorder %s12, 0
      %p53 = por %p51, %p52
      %p54 = scmp.ne.s32.totalorder %s46, %s48
      %p55 = scmp.eq.s32.totalorder %s17, 1
      %p56 = por %p54, %p55
      %p57 = scmp.ne.s32.totalorder %s48, %s49
      %p58 = scmp.eq.s32.totalorder %s17, 0
      %p59 = por %p57, %p58
      %p60 = scmp.ne.s32.totalorder %s48, %s49
      %p61 = scmp.eq.s32.totalorder %s18, 1
      %p62 = por %p60, %p61
      %p64 = scmp.ne.s32.totalorder %s49, %s63
      %p65 = scmp.eq.s32.totalorder %s18, 0
      %p66 = por %p64, %p65
      %s68 = sadd.s32 %s67, 1
      %p71 = scmp.eq.s32.totalorder %s12, 1
      %p72 = scmp.ne.s32.totalorder %s67, %s69
      %p73 = scmp.eq.s32.totalorder %s12, 0
      %p74 = por %p72, %p73
      %p75 = scmp.ne.s32.totalorder %s67, %s69
      %p76 = scmp.eq.s32.totalorder %s17, 1
      %p77 = por %p75, %p76
      %p78 = scmp.ne.s32.totalorder %s69, %s70
      %p79 = scmp.eq.s32.totalorder %s17, 0
      %p80 = por %p78, %p79
      %p81 = scmp.ne.s32.totalorder %s69, %s70
      %p82 = scmp.eq.s32.totalorder %s18, 1
      %p83 = por %p81, %p82
      %p85 = scmp.ne.s32.totalorder %s70, %s84
      %p86 = scmp.eq.s32.totalorder %s18, 0
      %p87 = por %p85, %p86
      %s88 = ssub.s32 %s12, %s19
      %p89 = scmp.eq.s32.totalorder %s88, 0
      %s91 = sadd.s32 %s90, 1
      %s92 = scalar_select %p89, %s90, %s91
      %p95 = pneg %p89
      %p96 = scmp.eq.s32.totalorder %s12, 1
      %p97 = por %p95, %p96
      %p98 = scmp.ne.s32.totalorder %s90, %s93
      %p99 = scmp.eq.s32.totalorder %s12, 0
      %p100 = por %p98, %p99
      %p101 = scmp.ne.s32.totalorder %s90, %s93
      %p102 = scmp.eq.s32.totalorder %s17, 1
      %p103 = por %p101, %p102
      %p104 = scmp.ne.s32.totalorder %s93, %s94
      %p105 = scmp.eq.s32.totalorder %s17, 0
      %p106 = por %p104, %p105
      %p107 = scmp.ne.s32.totalorder %s93, %s94
      %p108 = scmp.eq.s32.totalorder %s18, 1
      %p109 = por %p107, %p108
      %p111 = scmp.ne.s32.totalorder %s94, %s110
      %p112 = scmp.eq.s32.totalorder %s18, 0
      %p113 = por %p111, %p112
      %p114 = scmp.le.s32.totalorder 1, %s12
      %p115 = scmp.lt.s32.totalorder %s12, 3
      %p116 = pnand %p114, %p115
      %p117 = pneg %p116
      // Predicated region
      $region9: #{tpu_custom_call.1} parent=5 // pred_check
        _
      $region10: #{tpu_custom_call.1} parent=5 // pred_check_branch
        %119 = sbr.rel (%p116) target = $region12
      $region11: #{tpu_custom_call.1} parent=5 // pred_region
        %s120 = ssub.s32 %s12, 1
        // Predicated region
        $region13: #{tpu_custom_call.1} parent=11 // pred_check
          %p121 = pneg %p59
        $region14: #{tpu_custom_call.1} parent=11 // pred_check_branch
          %123 = sbr.rel (%p121) target = $region16
        $region15: #{tpu_custom_call.1} parent=11 // pred_region
          _
        $region16: #{tpu_custom_call.1} parent=11 // pred_fallthru
          _
        // Predicated region
        $region17: #{tpu_custom_call.1} parent=11 // pred_check
          %p124 = pneg %p80
        $region18: #{tpu_custom_call.1} parent=11 // pred_check_branch
          %126 = sbr.rel (%p124) target = $region20
        $region19: #{tpu_custom_call.1} parent=11 // pred_region
          _
        $region20: #{tpu_custom_call.1} parent=11 // pred_fallthru
          _
      $region12: #{tpu_custom_call.1} parent=5 // pred_fallthru
        _
      %p127 = scmp.lt.s32.totalorder %s12, 2
      // Predicated region
      $region21: #{tpu_custom_call.1} parent=5 // pred_check
        %p128 = pneg %p127
      $region22: #{tpu_custom_call.1} parent=5 // pred_check_branch
        %130 = sbr.rel (%p128) target = $region24
      $region23: #{tpu_custom_call.1} parent=5 // pred_region
        // Predicated region
        $region25: #{tpu_custom_call.1} parent=23 // pred_check
          %p131 = pneg %p32
        $region26: #{tpu_custom_call.1} parent=23 // pred_check_branch
          %133 = sbr.rel (%p131) target = $region28
        $region27: #{tpu_custom_call.1} parent=23 // pred_region
          %p134 = scmp.lt.s32.totalorder %s12, 1
          %s135 = scalar_select %p134, %s12, 1
          %s136 = smul.addr %s135, 44
          %s137 = smul.addr %s136, 8
          %s138 = scalar_lea.vmem %s0, %s137
        $region28: #{tpu_custom_call.1} parent=23 // pred_fallthru
          _
      $region24: #{tpu_custom_call.1} parent=5 // pred_fallthru
        _
      %p139 = scmp.le.s32.totalorder 1, %s12
      %p140 = scmp.lt.s32.totalorder %s12, 3
      %p141 = pnand %p139, %p140
      %p142 = pneg %p141
      // Predicated region
      $region29: #{tpu_custom_call.1} parent=5 // pred_check
        _
      $region30: #{tpu_custom_call.1} parent=5 // pred_check_branch
        %144 = sbr.rel (%p141) target = $region32
      $region31: #{tpu_custom_call.1} parent=5 // pred_region
        %s145 = ssub.s32 %s12, 1
        %p146 = scmp.lt.s32.totalorder %s17, 1
        %s147 = scalar_select %p146, %s17, 1
        %s148 = smul.addr %s147, 44
        %s149 = smul.addr %s148, 8
        %s150 = scalar_lea.vmem %s0, %s149
        %p151 = pneg %p38
        %p152 = pneg %p35
        %p153 = pneg %p59
        %p154 = pneg %p56
        %p155 = pneg %p80
        %p156 = pneg %p77
        %p157 = pneg %p106
        %p158 = pneg %p103
        %s159 = sand.u32 %s93, 1
        %s160 = scalar_lea.sflag [#allocation4], %s159
        %s161 = sand.u32 %s93, 1
        %s162 = smul.addr %s161, 72
        %s163 = scalar_lea.vmem [#allocation3], %s162
        %p164 = scmp.lt.s32.totalorder %s17, 1
        %s165 = scalar_select %p164, %s17, 1
        %s166 = smul.addr %s165, 44
        %s167 = smul.addr %s166, 8
        %s168 = scalar_lea.vmem %s0, %s167
        %170 = vst [vmem:[#allocation2] sm:$0xff] 0.0
        %171 = vst [vmem:[#allocation2 + $0x8] sm:$0xff] 0.0
        %172 = vst [vmem:[#allocation2 + $0x10] sm:$0xff] 0.0
        %173 = vst [vmem:[#allocation2 + $0x18] sm:$0xff] 0.0
        %174 = vst [vmem:[#allocation2 + $0x20] sm:$0xff] 0.0
        %175 = vst [vmem:[#allocation2 + $0x28] sm:$0xff] 0.0
        %176 = vst [vmem:[#allocation2 + $0x30] sm:$0xff] 0.0
        %177 = vst [vmem:[#allocation2 + $0x38] sm:$0xff] 0.0
        %178 = vst [vmem:[#allocation2 + $0x40] sm:$0xff] 0.0
        %v179 = vld [vmem:[%s168] sm:$0xff]
        %v180 = vld [vmem:[%s168 + $0x8] sm:$0xff]
        %v181 = vld [vmem:[%s168 + $0x10] sm:$0xff]
        %v182 = vld [vmem:[%s168 + $0x18] sm:$0xff]
        %v183 = vld [vmem:[%s168 + $0x20] sm:$0xff]
        %v184 = vld [vmem:[%s168 + $0x28] sm:$0xff]
        %v185 = vld [vmem:[%s168 + $0x30] sm:$0xff]
        %v186 = vld [vmem:[%s168 + $0x38] sm:$0xff]
        %v187 = vld [vmem:[%s168 + $0x40] sm:$0xff]
        %v188 = vpack.c.bf16 %v180, %v179
        %v189 = vpack.c.bf16 %v182, %v181
        %v190 = vpack.c.bf16 %v184, %v183
        %v191 = vpack.c.bf16 %v186, %v185
        %v192 = vpack.c.bf16 %v187, %v187
        %v193 = vld [vmem:[#allocation2] sm:$0xff]
        %v194 = vld [vmem:[#allocation2 + $0x8] sm:$0xff]
        %v195 = vld [vmem:[#allocation2 + $0x10] sm:$0xff]
        %v196 = vld [vmem:[#allocation2 + $0x18] sm:$0xff]
        %v197 = vld [vmem:[#allocation2 + $0x20] sm:$0xff]
        %v198 = vld [vmem:[#allocation2 + $0x28] sm:$0xff]
        %v199 = vld [vmem:[#allocation2 + $0x30] sm:$0xff]
        %v200 = vld [vmem:[#allocation2 + $0x38] sm:$0xff]
        %v201 = vld [vmem:[#allocation2 + $0x40] sm:$0xff]
        %v202 = vld [vmem:[%s1] sm:$0x3]
        %vm203 = vcmask 31744
        %v205 = vsel %vm203, %v188, 0
        %v208 = vsel %vm203, %v189, 0
        %v211 = vsel %vm203, %v190, 0
        %v214 = vsel %vm203, %v191, 0
        %v217 = vsel %vm203, %v192, 0
        %vm219 = vcmask 1041408
        %v221 = vsel %vm219, %v202, 0
        %223 = vmatprep.subr.bf16.mxu0 0
        %224 = vmatpush1.bf16.msra.mxu0 %v221
        %225 = vmatprep.subr.bf16.mxu0 0
        %226 = vmatpush1.bf16.msra.mxu0 0
        %227 = vmatprep.subr.bf16.mxu0 0
        %228 = vmatpush1.bf16.msra.mxu0 0
        %229 = vmatprep.subr.bf16.mxu0 0
        %230 = vmatpush1.bf16.msra.mxu0 0
        %231 = vmatprep.subr.bf16.mxu0 0
        %232 = vmatpush1.bf16.msra.mxu0 0
        %233 = vmatprep.subr.bf16.mxu0 0
        %234 = vmatpush1.bf16.msra.mxu0 0
        %235 = vmatprep.subr.bf16.mxu0 0
        %236 = vmatpush1.bf16.msra.mxu0 0
        %237 = vmatprep.subr.bf16.mxu0 0
        %238 = vmatpush1.bf16.msra.mxu0 0
        %239 = vmatprep.subr.bf16.mxu0 0
        %240 = vmatpush1.bf16.msra.mxu0 0
        %241 = vmatprep.subr.bf16.mxu0 0
        %242 = vmatpush1.bf16.msra.mxu0 0
        %243 = vmatprep.subr.bf16.mxu0 0
        %244 = vmatpush1.bf16.msra.mxu0 0
        %245 = vmatprep.subr.bf16.mxu0 0
        %246 = vmatpush1.bf16.msra.mxu0 0
        %247 = vmatprep.subr.bf16.mxu0 0
        %248 = vmatpush1.bf16.msra.mxu0 0
        %249 = vmatprep.subr.bf16.mxu0 0
        %250 = vmatpush1.bf16.msra.mxu0 0
        %251 = vmatprep.subr.bf16.mxu0 0
        %252 = vmatpush1.bf16.msra.mxu0 0
        %253 = vmatprep.subr.bf16.mxu0 0
        %254 = vmatpush1.bf16.msra.mxu0 0
        %255 = vmatprep.mubr.bf16.mxu0 0
        %256 = vmatmul.mubr.bf16.gmra.mrb[0].mxu0 %v205
        %v257 = vpop.f32.mrb[0].mxu0
        %v258 = vadd.f32 0.0, %v257
        %v259 = vpop.f32.mrb[0].mxu0
        %v260 = vpop.f32.mrb[0].mxu0
        %v261 = vadd.f32 0.0, %v260
        %v262 = vpop.f32.mrb[0].mxu0
        %263 = vmatprep.mubr.bf16.mxu0 0
        %264 = vmatmul.mubr.bf16.gmra.mrb[0].mxu0 %v208
        %v265 = vpop.f32.mrb[0].mxu0
        %v266 = vadd.f32 0.0, %v265
        %v267 = vpop.f32.mrb[0].mxu0
        %v268 = vpop.f32.mrb[0].mxu0
        %v269 = vadd.f32 0.0, %v268
        %v270 = vpop.f32.mrb[0].mxu0
        %271 = vmatprep.mubr.bf16.mxu0 0
        %272 = vmatmul.mubr.bf16.gmra.mrb[0].mxu0 %v211
        %v273 = vpop.f32.mrb[0].mxu0
        %v274 = vadd.f32 0.0, %v273
        %v275 = vpop.f32.mrb[0].mxu0
        %v276 = vpop.f32.mrb[0].mxu0
        %v277 = vadd.f32 0.0, %v276
        %v278 = vpop.f32.mrb[0].mxu0
        %279 = vmatprep.mubr.bf16.mxu0 0
        %280 = vmatmul.mubr.bf16.gmra.mrb[0].mxu0 %v214
        %v281 = vpop.f32.mrb[0].mxu0
        %v282 = vadd.f32 0.0, %v281
        %v283 = vpop.f32.mrb[0].mxu0
        %v284 = vpop.f32.mrb[0].mxu0
        %v285 = vadd.f32 0.0, %v284
        %v286 = vpop.f32.mrb[0].mxu0
        %287 = vmatprep.mubr.bf16.mxu0 0
        %288 = vmatmul.mubr.bf16.gmra.mrb[0].mxu0 %v217
        %v289 = vpop.f32.mrb[0].mxu0
        %v290 = vadd.f32 0.0, %v289
        %v291 = vpop.f32.mrb[0].mxu0
        %v292 = vpop.f32.mrb[0].mxu0
        %v293 = vpop.f32.mrb[0].mxu0
        %294 = vdwg.mxu0
        %v295 = vadd.f32 %v193, %v258
        %v296 = vadd.f32 %v194, %v261
        %v297 = vadd.f32 %v195, %v266
        %v298 = vadd.f32 %v196, %v269
        %v299 = vadd.f32 %v197, %v274
        %v300 = vadd.f32 %v198, %v277
        %v301 = vadd.f32 %v199, %v282
        %v302 = vadd.f32 %v200, %v285
        %v303 = vadd.f32 %v201, %v290
        %304 = vst [vmem:[#allocation2] sm:$0xff] %v295
        %305 = vst [vmem:[#allocation2 + $0x8] sm:$0xff] %v296
        %306 = vst [vmem:[#allocation2 + $0x10] sm:$0xff] %v297
        %307 = vst [vmem:[#allocation2 + $0x18] sm:$0xff] %v298
        %308 = vst [vmem:[#allocation2 + $0x20] sm:$0xff] %v299
        %309 = vst [vmem:[#allocation2 + $0x28] sm:$0xff] %v300
        %310 = vst [vmem:[#allocation2 + $0x30] sm:$0xff] %v301
        %311 = vst [vmem:[#allocation2 + $0x38] sm:$0xff] %v302
        %312 = vst [vmem:[#allocation2 + $0x40] sm:$0xff] %v303
        %s313 = scalar_lea.vmem %s168, 88
        %v314 = vld [vmem:[%s313] sm:$0xff]
        %v315 = vld [vmem:[%s313 + $0x8] sm:$0xff]
        %v316 = vld [vmem:[%s313 + $0x10] sm:$0xff]
        %v317 = vld [vmem:[%s313 + $0x18] sm:$0xff]
        %v318 = vld [vmem:[%s313 + $0x20] sm:$0xff]
        %v319 = vld [vmem:[%s313 + $0x28] sm:$0xff]
        %v320 = vld [vmem:[%s313 + $0x30] sm:$0xff]
        %v321 = vld [vmem:[%s313 + $0x38] sm:$0xff]
        %v322 = vld [vmem:[%s313 + $0x40] sm:$0xff]
        %v323 = vpack.c.bf16 %v315, %v314
        %v324 = vpack.c.bf16 %v317, %v316
        %v325 = vpack.c.bf16 %v319, %v318
        %v326 = vpack.c.bf16 %v321, %v320
        %v327 = vpack.c.bf16 %v322, %v322
        %v328 = vld [vmem:[#allocation2] sm:$0xff]
        %v329 = vld [vmem:[#allocation2 + $0x8] sm:$0xff]
        %v330 = vld [vmem:[#allocation2 + $0x10] sm:$0xff]
        %v331 = vld [vmem:[#allocation2 + $0x18] sm:$0xff]
        %v332 = vld [vmem:[#allocation2 + $0x20] sm:$0xff]
        %v333 = vld [vmem:[#allocation2 + $0x28] sm:$0xff]
        %v334 = vld [vmem:[#allocation2 + $0x30] sm:$0xff]
        %v335 = vld [vmem:[#allocation2 + $0x38] sm:$0xff]
        %v336 = vld [vmem:[#allocation2 + $0x40] sm:$0xff]
        %s337 = scalar_lea.vmem %s1, 2
        %v338 = vld [vmem:[%s337] sm:$0x3]
        %v340 = vsel %vm203, %v323, 0
        %v343 = vsel %vm203, %v324, 0
        %v346 = vsel %vm203, %v325, 0
        %v349 = vsel %vm203, %v326, 0
        %v352 = vsel %vm203, %v327, 0
        %v355 = vsel %vm219, %v338, 0
        %357 = vmatprep.subr.bf16.mxu0 0
        %358 = vmatpush1.bf16.msra.mxu0 %v355
        %359 = vmatprep.subr.bf16.mxu0 0
        %360 = vmatpush1.bf16.msra.mxu0 0
        %361 = vmatprep.subr.bf16.mxu0 0
        %362 = vmatpush1.bf16.msra.mxu0 0
        %363 = vmatprep.subr.bf16.mxu0 0
        %364 = vmatpush1.bf16.msra.mxu0 0
        %365 = vmatprep.subr.bf16.mxu0 0
        %366 = vmatpush1.bf16.msra.mxu0 0
        %367 = vmatprep.subr.bf16.mxu0 0
        %368 = vmatpush1.bf16.msra.mxu0 0
        %369 = vmatprep.subr.bf16.mxu0 0
        %370 = vmatpush1.bf16.msra.mxu0 0
        %371 = vmatprep.subr.bf16.mxu0 0
        %372 = vmatpush1.bf16.msra.mxu0 0
        %373 = vmatprep.subr.bf16.mxu0 0
        %374 = vmatpush1.bf16.msra.mxu0 0
        %375 = vmatprep.subr.bf16.mxu0 0
        %376 = vmatpush1.bf16.msra.mxu0 0
        %377 = vmatprep.subr.bf16.mxu0 0
        %378 = vmatpush1.bf16.msra.mxu0 0
        %379 = vmatprep.subr.bf16.mxu0 0
        %380 = vmatpush1.bf16.msra.mxu0 0
        %381 = vmatprep.subr.bf16.mxu0 0
        %382 = vmatpush1.bf16.msra.mxu0 0
        %383 = vmatprep.subr.bf16.mxu0 0
        %384 = vmatpush1.bf16.msra.mxu0 0
        %385 = vmatprep.subr.bf16.mxu0 0
        %386 = vmatpush1.bf16.msra.mxu0 0
        %387 = vmatprep.subr.bf16.mxu0 0
        %388 = vmatpush1.bf16.msra.mxu0 0
        %389 = vmatprep.mubr.bf16.mxu0 0
        %390 = vmatmul.mubr.bf16.gmra.mrb[0].mxu0 %v340
        %v391 = vpop.f32.mrb[0].mxu0
        %v392 = vadd.f32 0.0, %v391
        %v393 = vpop.f32.mrb[0].mxu0
        %v394 = vpop.f32.mrb[0].mxu0
        %v395 = vadd.f32 0.0, %v394
        %v396 = vpop.f32.mrb[0].mxu0
        %397 = vmatprep.mubr.bf16.mxu0 0
        %398 = vmatmul.mubr.bf16.gmra.mrb[0].mxu0 %v343
        %v399 = vpop.f32.mrb[0].mxu0
        %v400 = vadd.f32 0.0, %v399
        %v401 = vpop.f32.mrb[0].mxu0
        %v402 = vpop.f32.mrb[0].mxu0
        %v403 = vadd.f32 0.0, %v402
        %v404 = vpop.f32.mrb[0].mxu0
        %405 = vmatprep.mubr.bf16.mxu0 0
        %406 = vmatmul.mubr.bf16.gmra.mrb[0].mxu0 %v346
        %v407 = vpop.f32.mrb[0].mxu0
        %v408 = vadd.f32 0.0, %v407
        %v409 = vpop.f32.mrb[0].mxu0
        %v410 = vpop.f32.mrb[0].mxu0
        %v411 = vadd.f32 0.0, %v410
        %v412 = vpop.f32.mrb[0].mxu0
        %413 = vmatprep.mubr.bf16.mxu0 0
        %414 = vmatmul.mubr.bf16.gmra.mrb[0].mxu0 %v349
        %v415 = vpop.f32.mrb[0].mxu0
        %v416 = vadd.f32 0.0, %v415
        %v417 = vpop.f32.mrb[0].mxu0
        %v418 = vpop.f32.mrb[0].mxu0
        %v419 = vadd.f32 0.0, %v418
        %v420 = vpop.f32.mrb[0].mxu0
        %421 = vmatprep.mubr.bf16.mxu0 0
        %422 = vmatmul.mubr.bf16.gmra.mrb[0].mxu0 %v352
        %v423 = vpop.f32.mrb[0].mxu0
        %v424 = vadd.f32 0.0, %v423
        %v425 = vpop.f32.mrb[0].mxu0
        %v426 = vpop.f32.mrb[0].mxu0
        %v427 = vpop.f32.mrb[0].mxu0
        %428 = vdwg.mxu0
        %v429 = vadd.f32 %v328, %v392
        %v430 = vadd.f32 %v329, %v395
        %v431 = vadd.f32 %v330, %v400
        %v432 = vadd.f32 %v331, %v403
        %v433 = vadd.f32 %v332, %v408
        %v434 = vadd.f32 %v333, %v411
        %v435 = vadd.f32 %v334, %v416
        %v436 = vadd.f32 %v335, %v419
        %v437 = vadd.f32 %v336, %v424
        %438 = vst [vmem:[#allocation2] sm:$0xff] %v429
        %439 = vst [vmem:[#allocation2 + $0x8] sm:$0xff] %v430
        %440 = vst [vmem:[#allocation2 + $0x10] sm:$0xff] %v431
        %441 = vst [vmem:[#allocation2 + $0x18] sm:$0xff] %v432
        %442 = vst [vmem:[#allocation2 + $0x20] sm:$0xff] %v433
        %443 = vst [vmem:[#allocation2 + $0x28] sm:$0xff] %v434
        %444 = vst [vmem:[#allocation2 + $0x30] sm:$0xff] %v435
        %445 = vst [vmem:[#allocation2 + $0x38] sm:$0xff] %v436
        %446 = vst [vmem:[#allocation2 + $0x40] sm:$0xff] %v437
        %v447 = vld [vmem:[%s168 + $0x1] sm:$0xff]
        %v448 = vld [vmem:[%s168 + $0x9] sm:$0xff]
        %v449 = vld [vmem:[%s168 + $0x11] sm:$0xff]
        %v450 = vld [vmem:[%s168 + $0x19] sm:$0xff]
        %v451 = vld [vmem:[%s168 + $0x21] sm:$0xff]
        %v452 = vld [vmem:[%s168 + $0x29] sm:$0xff]
        %v453 = vld [vmem:[%s168 + $0x31] sm:$0xff]
        %v454 = vld [vmem:[%s168 + $0x39] sm:$0xff]
        %v455 = vld [vmem:[%s168 + $0x41] sm:$0xff]
        %v456 = vpack.c.bf16 %v448, %v447
        %v457 = vpack.c.bf16 %v450, %v449
        %v458 = vpack.c.bf16 %v452, %v451
        %v459 = vpack.c.bf16 %v454, %v453
        %v460 = vpack.c.bf16 %v455, %v455
        %v461 = vld [vmem:[#allocation2] sm:$0xff]
        %v462 = vld [vmem:[#allocation2 + $0x8] sm:$0xff]
        %v463 = vld [vmem:[#allocation2 + $0x10] sm:$0xff]
        %v464 = vld [vmem:[#allocation2 + $0x18] sm:$0xff]
        %v465 = vld [vmem:[#allocation2 + $0x20] sm:$0xff]
        %v466 = vld [vmem:[#allocation2 + $0x28] sm:$0xff]
        %v467 = vld [vmem:[#allocation2 + $0x30] sm:$0xff]
        %v468 = vld [vmem:[#allocation2 + $0x38] sm:$0xff]
        %v469 = vld [vmem:[#allocation2 + $0x40] sm:$0xff]
        %s470 = scalar_lea.vmem %s1, 4
        %v471 = vld [vmem:[%s470] sm:$0x3]
        %v473 = vsel %vm203, %v456, 0
        %v476 = vsel %vm203, %v457, 0
        %v479 = vsel %vm203, %v458, 0
        %v482 = vsel %vm203, %v459, 0
        %v485 = vsel %vm203, %v460, 0
        %v488 = vsel %vm219, %v471, 0
        %490 = vmatprep.subr.bf16.mxu0 0
        %491 = vmatpush1.bf16.msra.mxu0 %v488
        %492 = vmatprep.subr.bf16.mxu0 0
        %493 = vmatpush1.bf16.msra.mxu0 0
        %494 = vmatprep.subr.bf16.mxu0 0
        %495 = vmatpush1.bf16.msra.mxu0 0
        %496 = vmatprep.subr.bf16.mxu0 0
        %497 = vmatpush1.bf16.msra.mxu0 0
        %498 = vmatprep.subr.bf16.mxu0 0
        %499 = vmatpush1.bf16.msra.mxu0 0
        %500 = vmatprep.subr.bf16.mxu0 0
        %501 = vmatpush1.bf16.msra.mxu0 0
        %502 = vmatprep.subr.bf16.mxu0 0
        %503 = vmatpush1.bf16.msra.mxu0 0
        %504 = vmatprep.subr.bf16.mxu0 0
        %505 = vmatpush1.bf16.msra.mxu0 0
        %506 = vmatprep.subr.bf16.mxu0 0
        %507 = vmatpush1.bf16.msra.mxu0 0
        %508 = vmatprep.subr.bf16.mxu0 0
        %509 = vmatpush1.bf16.msra.mxu0 0
        %510 = vmatprep.subr.bf16.mxu0 0
        %511 = vmatpush1.bf16.msra.mxu0 0
        %512 = vmatprep.subr.bf16.mxu0 0
        %513 = vmatpush1.bf16.msra.mxu0 0
        %514 = vmatprep.subr.bf16.mxu0 0
        %515 = vmatpush1.bf16.msra.mxu0 0
        %516 = vmatprep.subr.bf16.mxu0 0
        %517 = vmatpush1.bf16.msra.mxu0 0
        %518 = vmatprep.subr.bf16.mxu0 0
        %519 = vmatpush1.bf16.msra.mxu0 0
        %520 = vmatprep.subr.bf16.mxu0 0
        %521 = vmatpush1.bf16.msra.mxu0 0
        %522 = vmatprep.mubr.bf16.mxu0 0
        %523 = vmatmul.mubr.bf16.gmra.mrb[0].mxu0 %v473
        %v524 = vpop.f32.mrb[0].mxu0
        %v525 = vadd.f32 0.0, %v524
        %v526 = vpop.f32.mrb[0].mxu0
        %v527 = vpop.f32.mrb[0].mxu0
        %v528 = vadd.f32 0.0, %v527
        %v529 = vpop.f32.mrb[0].mxu0
        %530 = vmatprep.mubr.bf16.mxu0 0
        %531 = vmatmul.mubr.bf16.gmra.mrb[0].mxu0 %v476
        %v532 = vpop.f32.mrb[0].mxu0
        %v533 = vadd.f32 0.0, %v532
        %v534 = vpop.f32.mrb[0].mxu0
        %v535 = vpop.f32.mrb[0].mxu0
        %v536 = vadd.f32 0.0, %v535
        %v537 = vpop.f32.mrb[0].mxu0
        %538 = vmatprep.mubr.bf16.mxu0 0
        %539 = vmatmul.mubr.bf16.gmra.mrb[0].mxu0 %v479
        %v540 = vpop.f32.mrb[0].mxu0
        %v541 = vadd.f32 0.0, %v540
        %v542 = vpop.f32.mrb[0].mxu0
        %v543 = vpop.f32.mrb[0].mxu0
        %v544 = vadd.f32 0.0, %v543
        %v545 = vpop.f32.mrb[0].mxu0
        %546 = vmatprep.mubr.bf16.mxu0 0
        %547 = vmatmul.mubr.bf16.gmra.mrb[0].mxu0 %v482
        %v548 = vpop.f32.mrb[0].mxu0
        %v549 = vadd.f32 0.0, %v548
        %v550 = vpop.f32.mrb[0].mxu0
        %v551 = vpop.f32.mrb[0].mxu0
        %v552 = vadd.f32 0.0, %v551
        %v553 = vpop.f32.mrb[0].mxu0
        %554 = vmatprep.mubr.bf16.mxu0 0
        %555 = vmatmul.mubr.bf16.gmra.mrb[0].mxu0 %v485
        %v556 = vpop.f32.mrb[0].mxu0
        %v557 = vadd.f32 0.0, %v556
        %v558 = vpop.f32.mrb[0].mxu0
        %v559 = vpop.f32.mrb[0].mxu0
        %v560 = vpop.f32.mrb[0].mxu0
        %561 = vdwg.mxu0
        %v562 = vadd.f32 %v461, %v525
        %v563 = vadd.f32 %v462, %v528
        %v564 = vadd.f32 %v463, %v533
        %v565 = vadd.f32 %v464, %v536
        %v566 = vadd.f32 %v465, %v541
        %v567 = vadd.f32 %v466, %v544
        %v568 = vadd.f32 %v467, %v549
        %v569 = vadd.f32 %v468, %v552
        %v570 = vadd.f32 %v469, %v557
        %571 = vst [vmem:[#allocation2] sm:$0xff] %v562
        %572 = vst [vmem:[#allocation2 + $0x8] sm:$0xff] %v563
        %573 = vst [vmem:[#allocation2 + $0x10] sm:$0xff] %v564
        %574 = vst [vmem:[#allocation2 + $0x18] sm:$0xff] %v565
        %575 = vst [vmem:[#allocation2 + $0x20] sm:$0xff] %v566
        %576 = vst [vmem:[#allocation2 + $0x28] sm:$0xff] %v567
        %577 = vst [vmem:[#allocation2 + $0x30] sm:$0xff] %v568
        %578 = vst [vmem:[#allocation2 + $0x38] sm:$0xff] %v569
        %579 = vst [vmem:[#allocation2 + $0x40] sm:$0xff] %v570
        %s580 = scalar_lea.vmem %s168, 176
        %v581 = vld [vmem:[%s580] sm:$0xff]
        %v582 = vld [vmem:[%s580 + $0x8] sm:$0xff]
        %v583 = vld [vmem:[%s580 + $0x10] sm:$0xff]
        %v584 = vld [vmem:[%s580 + $0x18] sm:$0xff]
        %v585 = vld [vmem:[%s580 + $0x20] sm:$0xff]
        %v586 = vld [vmem:[%s580 + $0x28] sm:$0xff]
        %v587 = vld [vmem:[%s580 + $0x30] sm:$0xff]
        %v588 = vld [vmem:[%s580 + $0x38] sm:$0xff]
        %v589 = vld [vmem:[%s580 + $0x40] sm:$0xff]
        %v590 = vpack.c.bf16 %v582, %v581
        %v591 = vpack.c.bf16 %v584, %v583
        %v592 = vpack.c.bf16 %v586, %v585
        %v593 = vpack.c.bf16 %v588, %v587
        %v594 = vpack.c.bf16 %v589, %v589
        %v595 = vld [vmem:[#allocation2] sm:$0xff]
        %v596 = vld [vmem:[#allocation2 + $0x8] sm:$0xff]
        %v597 = vld [vmem:[#allocation2 + $0x10] sm:$0xff]
        %v598 = vld [vmem:[#allocation2 + $0x18] sm:$0xff]
        %v599 = vld [vmem:[#allocation2 + $0x20] sm:$0xff]
        %v600 = vld [vmem:[#allocation2 + $0x28] sm:$0xff]
        %v601 = vld [vmem:[#allocation2 + $0x30] sm:$0xff]
        %v602 = vld [vmem:[#allocation2 + $0x38] sm:$0xff]
        %v603 = vld [vmem:[#allocation2 + $0x40] sm:$0xff]
        %s604 = scalar_lea.vmem %s1, 6
        %v605 = vld [vmem:[%s604] sm:$0x3]
        %v607 = vsel %vm203, %v590, 0
        %v610 = vsel %vm203, %v591, 0
        %v613 = vsel %vm203, %v592, 0
        %v616 = vsel %vm203, %v593, 0
        %v619 = vsel %vm203, %v594, 0
        %v622 = vsel %vm219, %v605, 0
        %624 = vmatprep.subr.bf16.mxu0 0
        %625 = vmatpush1.bf16.msra.mxu0 %v622
        %626 = vmatprep.subr.bf16.mxu0 0
        %627 = vmatpush1.bf16.msra.mxu0 0
        %628 = vmatprep.subr.bf16.mxu0 0
        %629 = vmatpush1.bf16.msra.mxu0 0
        %630 = vmatprep.subr.bf16.mxu0 0
        %631 = vmatpush1.bf16.msra.mxu0 0
        %632 = vmatprep.subr.bf16.mxu0 0
        %633 = vmatpush1.bf16.msra.mxu0 0
        %634 = vmatprep.subr.bf16.mxu0 0
        %635 = vmatpush1.bf16.msra.mxu0 0
        %636 = vmatprep.subr.bf16.mxu0 0
        %637 = vmatpush1.bf16.msra.mxu0 0
        %638 = vmatprep.subr.bf16.mxu0 0
        %639 = vmatpush1.bf16.msra.mxu0 0
        %640 = vmatprep.subr.bf16.mxu0 0
        %641 = vmatpush1.bf16.msra.mxu0 0
        %642 = vmatprep.subr.bf16.mxu0 0
        %643 = vmatpush1.bf16.msra.mxu0 0
        %644 = vmatprep.subr.bf16.mxu0 0
        %645 = vmatpush1.bf16.msra.mxu0 0
        %646 = vmatprep.subr.bf16.mxu0 0
        %647 = vmatpush1.bf16.msra.mxu0 0
        %648 = vmatprep.subr.bf16.mxu0 0
        %649 = vmatpush1.bf16.msra.mxu0 0
        %650 = vmatprep.subr.bf16.mxu0 0
        %651 = vmatpush1.bf16.msra.mxu0 0
        %652 = vmatprep.subr.bf16.mxu0 0
        %653 = vmatpush1.bf16.msra.mxu0 0
        %654 = vmatprep.subr.bf16.mxu0 0
        %655 = vmatpush1.bf16.msra.mxu0 0
        %656 = vmatprep.mubr.bf16.mxu0 0
        %657 = vmatmul.mubr.bf16.gmra.mrb[0].mxu0 %v607
        %v658 = vpop.f32.mrb[0].mxu0
        %v659 = vadd.f32 0.0, %v658
        %v660 = vpop.f32.mrb[0].mxu0
        %v661 = vpop.f32.mrb[0].mxu0
        %v662 = vadd.f32 0.0, %v661
        %v663 = vpop.f32.mrb[0].mxu0
        %664 = vmatprep.mubr.bf16.mxu0 0
        %665 = vmatmul.mubr.bf16.gmra.mrb[0].mxu0 %v610
        %v666 = vpop.f32.mrb[0].mxu0
        %v667 = vadd.f32 0.0, %v666
        %v668 = vpop.f32.mrb[0].mxu0
        %v669 = vpop.f32.mrb[0].mxu0
        %v670 = vadd.f32 0.0, %v669
        %v671 = vpop.f32.mrb[0].mxu0
        %672 = vmatprep.mubr.bf16.mxu0 0
        %673 = vmatmul.mubr.bf16.gmra.mrb[0].mxu0 %v613
        %v674 = vpop.f32.mrb[0].mxu0
        %v675 = vadd.f32 0.0, %v674
        %v676 = vpop.f32.mrb[0].mxu0
        %v677 = vpop.f32.mrb[0].mxu0
        %v678 = vadd.f32 0.0, %v677
        %v679 = vpop.f32.mrb[0].mxu0
        %680 = vmatprep.mubr.bf16.mxu0 0
        %681 = vmatmul.mubr.bf16.gmra.mrb[0].mxu0 %v616
        %v682 = vpop.f32.mrb[0].mxu0
        %v683 = vadd.f32 0.0, %v682
        %v684 = vpop.f32.mrb[0].mxu0
        %v685 = vpop.f32.mrb[0].mxu0
        %v686 = vadd.f32 0.0, %v685
        %v687 = vpop.f32.mrb[0].mxu0
        %688 = vmatprep.mubr.bf16.mxu0 0
        %689 = vmatmul.mubr.bf16.gmra.mrb[0].mxu0 %v619
        %v690 = vpop.f32.mrb[0].mxu0
        %v691 = vadd.f32 0.0, %v690
        %v692 = vpop.f32.mrb[0].mxu0
        %v693 = vpop.f32.mrb[0].mxu0
        %v694 = vpop.f32.mrb[0].mxu0
        %695 = vdwg.mxu0
        %v696 = vadd.f32 %v595, %v659
        %v697 = vadd.f32 %v596, %v662
        %v698 = vadd.f32 %v597, %v667
        %v699 = vadd.f32 %v598, %v670
        %v700 = vadd.f32 %v599, %v675
        %v701 = vadd.f32 %v600, %v678
        %v702 = vadd.f32 %v601, %v683
        %v703 = vadd.f32 %v602, %v686
        %v704 = vadd.f32 %v603, %v691
        %705 = vst [vmem:[#allocation2] sm:$0xff] %v696
        %706 = vst [vmem:[#allocation2 + $0x8] sm:$0xff] %v697
        %707 = vst [vmem:[#allocation2 + $0x10] sm:$0xff] %v698
        %708 = vst [vmem:[#allocation2 + $0x18] sm:$0xff] %v699
        %709 = vst [vmem:[#allocation2 + $0x20] sm:$0xff] %v700
        %710 = vst [vmem:[#allocation2 + $0x28] sm:$0xff] %v701
        %711 = vst [vmem:[#allocation2 + $0x30] sm:$0xff] %v702
        %712 = vst [vmem:[#allocation2 + $0x38] sm:$0xff] %v703
        %713 = vst [vmem:[#allocation2 + $0x40] sm:$0xff] %v704
        %s714 = scalar_lea.vmem %s168, 264
        %v715 = vld [vmem:[%s714] sm:$0xff]
        %v716 = vld [vmem:[%s714 + $0x8] sm:$0xff]
        %v717 = vld [vmem:[%s714 + $0x10] sm:$0xff]
        %v718 = vld [vmem:[%s714 + $0x18] sm:$0xff]
        %v719 = vld [vmem:[%s714 + $0x20] sm:$0xff]
        %v720 = vld [vmem:[%s714 + $0x28] sm:$0xff]
        %v721 = vld [vmem:[%s714 + $0x30] sm:$0xff]
        %v722 = vld [vmem:[%s714 + $0x38] sm:$0xff]
        %v723 = vld [vmem:[%s714 + $0x40] sm:$0xff]
        %v724 = vpack.c.bf16 %v716, %v715
        %v725 = vpack.c.bf16 %v718, %v717
        %v726 = vpack.c.bf16 %v720, %v719
        %v727 = vpack.c.bf16 %v722, %v721
        %v728 = vpack.c.bf16 %v723, %v723
        %v729 = vld [vmem:[#allocation2] sm:$0xff]
        %v730 = vld [vmem:[#allocation2 + $0x8] sm:$0xff]
        %v731 = vld [vmem:[#allocation2 + $0x10] sm:$0xff]
        %v732 = vld [vmem:[#allocation2 + $0x18] sm:$0xff]
        %v733 = vld [vmem:[#allocation2 + $0x20] sm:$0xff]
        %v734 = vld [vmem:[#allocation2 + $0x28] sm:$0xff]
        %v735 = vld [vmem:[#allocation2 + $0x30] sm:$0xff]
        %v736 = vld [vmem:[#allocation2 + $0x38] sm:$0xff]
        %v737 = vld [vmem:[#allocation2 + $0x40] sm:$0xff]
        %s738 = scalar_lea.vmem %s1, 8
        %v739 = vld [vmem:[%s738] sm:$0x3]
        %v741 = vsel %vm203, %v724, 0
        %v744 = vsel %vm203, %v725, 0
        %v747 = vsel %vm203, %v726, 0
        %v750 = vsel %vm203, %v727, 0
        %v753 = vsel %vm203, %v728, 0
        %v756 = vsel %vm219, %v739, 0
        %758 = vmatprep.subr.bf16.mxu0 0
        %759 = vmatpush1.bf16.msra.mxu0 %v756
        %760 = vmatprep.subr.bf16.mxu0 0
        %761 = vmatpush1.bf16.msra.mxu0 0
        %762 = vmatprep.subr.bf16.mxu0 0
        %763 = vmatpush1.bf16.msra.mxu0 0
        %764 = vmatprep.subr.bf16.mxu0 0
        %765 = vmatpush1.bf16.msra.mxu0 0
        %766 = vmatprep.subr.bf16.mxu0 0
        %767 = vmatpush1.bf16.msra.mxu0 0
        %768 = vmatprep.subr.bf16.mxu0 0
        %769 = vmatpush1.bf16.msra.mxu0 0
        %770 = vmatprep.subr.bf16.mxu0 0
        %771 = vmatpush1.bf16.msra.mxu0 0
        %772 = vmatprep.subr.bf16.mxu0 0
        %773 = vmatpush1.bf16.msra.mxu0 0
        %774 = vmatprep.subr.bf16.mxu0 0
        %775 = vmatpush1.bf16.msra.mxu0 0
        %776 = vmatprep.subr.bf16.mxu0 0
        %777 = vmatpush1.bf16.msra.mxu0 0
        %778 = vmatprep.subr.bf16.mxu0 0
        %779 = vmatpush1.bf16.msra.mxu0 0
        %780 = vmatprep.subr.bf16.mxu0 0
        %781 = vmatpush1.bf16.msra.mxu0 0
        %782 = vmatprep.subr.bf16.mxu0 0
        %783 = vmatpush1.bf16.msra.mxu0 0
        %784 = vmatprep.subr.bf16.mxu0 0
        %785 = vmatpush1.bf16.msra.mxu0 0
        %786 = vmatprep.subr.bf16.mxu0 0
        %787 = vmatpush1.bf16.msra.mxu0 0
        %788 = vmatprep.subr.bf16.mxu0 0
        %789 = vmatpush1.bf16.msra.mxu0 0
        %790 = vmatprep.mubr.bf16.mxu0 0
        %791 = vmatmul.mubr.bf16.gmra.mrb[0].mxu0 %v741
        %v792 = vpop.f32.mrb[0].mxu0
        %v793 = vadd.f32 0.0, %v792
        %v794 = vpop.f32.mrb[0].mxu0
        %v795 = vpop.f32.mrb[0].mxu0
        %v796 = vadd.f32 0.0, %v795
        %v797 = vpop.f32.mrb[0].mxu0
        %798 = vmatprep.mubr.bf16.mxu0 0
        %799 = vmatmul.mubr.bf16.gmra.mrb[0].mxu0 %v744
        %v800 = vpop.f32.mrb[0].mxu0
        %v801 = vadd.f32 0.0, %v800
        %v802 = vpop.f32.mrb[0].mxu0
        %v803 = vpop.f32.mrb[0].mxu0
        %v804 = vadd.f32 0.0, %v803
        %v805 = vpop.f32.mrb[0].mxu0
        %806 = vmatprep.mubr.bf16.mxu0 0
        %807 = vmatmul.mubr.bf16.gmra.mrb[0].mxu0 %v747
        %v808 = vpop.f32.mrb[0].mxu0
        %v809 = vadd.f32 0.0, %v808
        %v810 = vpop.f32.mrb[0].mxu0
        %v811 = vpop.f32.mrb[0].mxu0
        %v812 = vadd.f32 0.0, %v811
        %v813 = vpop.f32.mrb[0].mxu0
        %814 = vmatprep.mubr.bf16.mxu0 0
        %815 = vmatmul.mubr.bf16.gmra.mrb[0].mxu0 %v750
        %v816 = vpop.f32.mrb[0].mxu0
        %v817 = vadd.f32 0.0, %v816
        %v818 = vpop.f32.mrb[0].mxu0
        %v819 = vpop.f32.mrb[0].mxu0
        %v820 = vadd.f32 0.0, %v819
        %v821 = vpop.f32.mrb[0].mxu0
        %822 = vmatprep.mubr.bf16.mxu0 0
        %823 = vmatmul.mubr.bf16.gmra.mrb[0].mxu0 %v753
        %v824 = vpop.f32.mrb[0].mxu0
        %v825 = vadd.f32 0.0, %v824
        %v826 = vpop.f32.mrb[0].mxu0
        %v827 = vpop.f32.mrb[0].mxu0
        %v828 = vpop.f32.mrb[0].mxu0
        %829 = vdwg.mxu0
        %v830 = vadd.f32 %v729, %v793
        %v831 = vadd.f32 %v730, %v796
        %v832 = vadd.f32 %v731, %v801
        %v833 = vadd.f32 %v732, %v804
        %v834 = vadd.f32 %v733, %v809
        %v835 = vadd.f32 %v734, %v812
        %v836 = vadd.f32 %v735, %v817
        %v837 = vadd.f32 %v736, %v820
        %v838 = vadd.f32 %v737, %v825
        %839 = vst [vmem:[#allocation2] sm:$0xff] %v830
        %840 = vst [vmem:[#allocation2 + $0x8] sm:$0xff] %v831
        %841 = vst [vmem:[#allocation2 + $0x10] sm:$0xff] %v832
        %842 = vst [vmem:[#allocation2 + $0x18] sm:$0xff] %v833
        %843 = vst [vmem:[#allocation2 + $0x20] sm:$0xff] %v834
        %844 = vst [vmem:[#allocation2 + $0x28] sm:$0xff] %v835
        %845 = vst [vmem:[#allocation2 + $0x30] sm:$0xff] %v836
        %846 = vst [vmem:[#allocation2 + $0x38] sm:$0xff] %v837
        %847 = vst [vmem:[#allocation2 + $0x40] sm:$0xff] %v838
        %v848 = vld [vmem:[%s580 + $0x1] sm:$0xff]
        %v849 = vld [vmem:[%s580 + $0x9] sm:$0xff]
        %v850 = vld [vmem:[%s580 + $0x11] sm:$0xff]
        %v851 = vld [vmem:[%s580 + $0x19] sm:$0xff]
        %v852 = vld [vmem:[%s580 + $0x21] sm:$0xff]
        %v853 = vld [vmem:[%s580 + $0x29] sm:$0xff]
        %v854 = vld [vmem:[%s580 + $0x31] sm:$0xff]
        %v855 = vld [vmem:[%s580 + $0x39] sm:$0xff]
        %v856 = vld [vmem:[%s580 + $0x41] sm:$0xff]
        %v857 = vpack.c.bf16 %v849, %v848
        %v858 = vpack.c.bf16 %v851, %v850
        %v859 = vpack.c.bf16 %v853, %v852
        %v860 = vpack.c.bf16 %v855, %v854
        %v861 = vpack.c.bf16 %v856, %v856
        %v862 = vld [vmem:[#allocation2] sm:$0xff]
        %v863 = vld [vmem:[#allocation2 + $0x8] sm:$0xff]
        %v864 = vld [vmem:[#allocation2 + $0x10] sm:$0xff]
        %v865 = vld [vmem:[#allocation2 + $0x18] sm:$0xff]
        %v866 = vld [vmem:[#allocation2 + $0x20] sm:$0xff]
        %v867 = vld [vmem:[#allocation2 + $0x28] sm:$0xff]
        %v868 = vld [vmem:[#allocation2 + $0x30] sm:$0xff]
        %v869 = vld [vmem:[#allocation2 + $0x38] sm:$0xff]
        %v870 = vld [vmem:[#allocation2 + $0x40] sm:$0xff]
        %s871 = scalar_lea.vmem %s1, 10
        %v872 = vld [vmem:[%s871] sm:$0x3]
        %v874 = vsel %vm203, %v857, 0
        %v877 = vsel %vm203, %v858, 0
        %v880 = vsel %vm203, %v859, 0
        %v883 = vsel %vm203, %v860, 0
        %v886 = vsel %vm203, %v861, 0
        %v889 = vsel %vm219, %v872, 0
        %891 = vmatprep.subr.bf16.mxu0 0
        %892 = vmatpush1.bf16.msra.mxu0 %v889
        %893 = vmatprep.subr.bf16.mxu0 0
        %894 = vmatpush1.bf16.msra.mxu0 0
        %895 = vmatprep.subr.bf16.mxu0 0
        %896 = vmatpush1.bf16.msra.mxu0 0
        %897 = vmatprep.subr.bf16.mxu0 0
        %898 = vmatpush1.bf16.msra.mxu0 0
        %899 = vmatprep.subr.bf16.mxu0 0
        %900 = vmatpush1.bf16.msra.mxu0 0
        %901 = vmatprep.subr.bf16.mxu0 0
        %902 = vmatpush1.bf16.msra.mxu0 0
        %903 = vmatprep.subr.bf16.mxu0 0
        %904 = vmatpush1.bf16.msra.mxu0 0
        %905 = vmatprep.subr.bf16.mxu0 0
        %906 = vmatpush1.bf16.msra.mxu0 0
        %907 = vmatprep.subr.bf16.mxu0 0
        %908 = vmatpush1.bf16.msra.mxu0 0
        %909 = vmatprep.subr.bf16.mxu0 0
        %910 = vmatpush1.bf16.msra.mxu0 0
        %911 = vmatprep.subr.bf16.mxu0 0
        %912 = vmatpush1.bf16.msra.mxu0 0
        %913 = vmatprep.subr.bf16.mxu0 0
        %914 = vmatpush1.bf16.msra.mxu0 0
        %915 = vmatprep.subr.bf16.mxu0 0
        %916 = vmatpush1.bf16.msra.mxu0 0
        %917 = vmatprep.subr.bf16.mxu0 0
        %918 = vmatpush1.bf16.msra.mxu0 0
        %919 = vmatprep.subr.bf16.mxu0 0
        %920 = vmatpush1.bf16.msra.mxu0 0
        %921 = vmatprep.subr.bf16.mxu0 0
        %922 = vmatpush1.bf16.msra.mxu0 0
        %923 = vmatprep.mubr.bf16.mxu0 0
        %924 = vmatmul.mubr.bf16.gmra.mrb[0].mxu0 %v874
        %v925 = vpop.f32.mrb[0].mxu0
        %v926 = vadd.f32 0.0, %v925
        %v927 = vpop.f32.mrb[0].mxu0
        %v928 = vpop.f32.mrb[0].mxu0
        %v929 = vadd.f32 0.0, %v928
        %v930 = vpop.f32.mrb[0].mxu0
        %931 = vmatprep.mubr.bf16.mxu0 0
        %932 = vmatmul.mubr.bf16.gmra.mrb[0].mxu0 %v877
        %v933 = vpop.f32.mrb[0].mxu0
        %v934 = vadd.f32 0.0, %v933
        %v935 = vpop.f32.mrb[0].mxu0
        %v936 = vpop.f32.mrb[0].mxu0
        %v937 = vadd.f32 0.0, %v936
        %v938 = vpop.f32.mrb[0].mxu0
        %939 = vmatprep.mubr.bf16.mxu0 0
        %940 = vmatmul.mubr.bf16.gmra.mrb[0].mxu0 %v880
        %v941 = vpop.f32.mrb[0].mxu0
        %v942 = vadd.f32 0.0, %v941
        %v943 = vpop.f32.mrb[0].mxu0
        %v944 = vpop.f32.mrb[0].mxu0
        %v945 = vadd.f32 0.0, %v944
        %v946 = vpop.f32.mrb[0].mxu0
        %947 = vmatprep.mubr.bf16.mxu0 0
        %948 = vmatmul.mubr.bf16.gmra.mrb[0].mxu0 %v883
        %v949 = vpop.f32.mrb[0].mxu0
        %v950 = vadd.f32 0.0, %v949
        %v951 = vpop.f32.mrb[0].mxu0
        %v952 = vpop.f32.mrb[0].mxu0
        %v953 = vadd.f32 0.0, %v952
        %v954 = vpop.f32.mrb[0].mxu0
        %955 = vmatprep.mubr.bf16.mxu0 0
        %956 = vmatmul.mubr.bf16.gmra.mrb[0].mxu0 %v886
        %v957 = vpop.f32.mrb[0].mxu0
        %v958 = vadd.f32 0.0, %v957
        %v959 = vpop.f32.mrb[0].mxu0
        %v960 = vpop.f32.mrb[0].mxu0
        %v961 = vpop.f32.mrb[0].mxu0
        %962 = vdwg.mxu0
        %v963 = vadd.f32 %v862, %v926
        %v964 = vadd.f32 %v863, %v929
        %v965 = vadd.f32 %v864, %v934
        %v966 = vadd.f32 %v865, %v937
        %v967 = vadd.f32 %v866, %v942
        %v968 = vadd.f32 %v867, %v945
        %v969 = vadd.f32 %v868, %v950
        %v970 = vadd.f32 %v869, %v953
        %v971 = vadd.f32 %v870, %v958
        %972 = vst [vmem:[#allocation2] sm:$0xff] %v963
        %973 = vst [vmem:[#allocation2 + $0x8] sm:$0xff] %v964
        %974 = vst [vmem:[#allocation2 + $0x10] sm:$0xff] %v965
        %975 = vst [vmem:[#allocation2 + $0x18] sm:$0xff] %v966
        %976 = vst [vmem:[#allocation2 + $0x20] sm:$0xff] %v967
        %977 = vst [vmem:[#allocation2 + $0x28] sm:$0xff] %v968
        %978 = vst [vmem:[#allocation2 + $0x30] sm:$0xff] %v969
        %979 = vst [vmem:[#allocation2 + $0x38] sm:$0xff] %v970
        %980 = vst [vmem:[#allocation2 + $0x40] sm:$0xff] %v971
        %v981 = vld [vmem:[%s168 + $0x9] sm:$0xff]
        %v982 = vld [vmem:[%s168 + $0x11] sm:$0xff]
        %v983 = vld [vmem:[%s168 + $0x19] sm:$0xff]
        %v984 = vld [vmem:[%s168 + $0x21] sm:$0xff]
        %v985 = vld [vmem:[%s168 + $0x29] sm:$0xff]
        %v986 = vld [vmem:[%s168 + $0x31] sm:$0xff]
        %v987 = vld [vmem:[%s168 + $0x39] sm:$0xff]
        %v988 = vld [vmem:[%s168 + $0x41] sm:$0xff]
        %v989 = vld [vmem:[%s168 + $0x49] sm:$0xff]
        %v990 = vpack.c.bf16 %v982, %v981
        %v991 = vpack.c.bf16 %v984, %v983
        %v992 = vpack.c.bf16 %v986, %v985
        %v993 = vpack.c.bf16 %v988, %v987
        %v994 = vpack.c.bf16 %v989, %v989
        %v995 = vld [vmem:[#allocation2] sm:$0xff]
        %v996 = vld [vmem:[#allocation2 + $0x8] sm:$0xff]
        %v997 = vld [vmem:[#allocation2 + $0x10] sm:$0xff]
        %v998 = vld [vmem:[#allocation2 + $0x18] sm:$0xff]
        %v999 = vld [vmem:[#allocation2 + $0x20] sm:$0xff]
        %v1000 = vld [vmem:[#allocation2 + $0x28] sm:$0xff]
        %v1001 = vld [vmem:[#allocation2 + $0x30] sm:$0xff]
        %v1002 = vld [vmem:[#allocation2 + $0x38] sm:$0xff]
        %v1003 = vld [vmem:[#allocation2 + $0x40] sm:$0xff]
        %s1004 = scalar_lea.vmem %s1, 12
        %v1005 = vld [vmem:[%s1004] sm:$0x3]
        %v1007 = vsel %vm203, %v990, 0
        %v1010 = vsel %vm203, %v991, 0
        %v1013 = vsel %vm203, %v992, 0
        %v1016 = vsel %vm203, %v993, 0
        %v1019 = vsel %vm203, %v994, 0
        %v1022 = vsel %vm219, %v1005, 0
        %1024 = vmatprep.subr.bf16.mxu0 0
        %1025 = vmatpush1.bf16.msra.mxu0 %v1022
        %1026 = vmatprep.subr.bf16.mxu0 0
        %1027 = vmatpush1.bf16.msra.mxu0 0
        %1028 = vmatprep.subr.bf16.mxu0 0
        %1029 = vmatpush1.bf16.msra.mxu0 0
        %1030 = vmatprep.subr.bf16.mxu0 0
        %1031 = vmatpush1.bf16.msra.mxu0 0
        %1032 = vmatprep.subr.bf16.mxu0 0
        %1033 = vmatpush1.bf16.msra.mxu0 0
        %1034 = vmatprep.subr.bf16.mxu0 0
        %1035 = vmatpush1.bf16.msra.mxu0 0
        %1036 = vmatprep.subr.bf16.mxu0 0
        %1037 = vmatpush1.bf16.msra.mxu0 0
        %1038 = vmatprep.subr.bf16.mxu0 0
        %1039 = vmatpush1.bf16.msra.mxu0 0
        %1040 = vmatprep.subr.bf16.mxu0 0
        %1041 = vmatpush1.bf16.msra.mxu0 0
        %1042 = vmatprep.subr.bf16.mxu0 0
        %1043 = vmatpush1.bf16.msra.mxu0 0
        %1044 = vmatprep.subr.bf16.mxu0 0
        %1045 = vmatpush1.bf16.msra.mxu0 0
        %1046 = vmatprep.subr.bf16.mxu0 0
        %1047 = vmatpush1.bf16.msra.mxu0 0
        %1048 = vmatprep.subr.bf16.mxu0 0
        %1049 = vmatpush1.bf16.msra.mxu0 0
        %1050 = vmatprep.subr.bf16.mxu0 0
        %1051 = vmatpush1.bf16.msra.mxu0 0
        %1052 = vmatprep.subr.bf16.mxu0 0
        %1053 = vmatpush1.bf16.msra.mxu0 0
        %1054 = vmatprep.subr.bf16.mxu0 0
        %1055 = vmatpush1.bf16.msra.mxu0 0
        %1056 = vmatprep.mubr.bf16.mxu0 0
        %1057 = vmatmul.mubr.bf16.gmra.mrb[0].mxu0 %v1007
        %v1058 = vpop.f32.mrb[0].mxu0
        %v1059 = vadd.f32 0.0, %v1058
        %v1060 = vpop.f32.mrb[0].mxu0
        %v1061 = vpop.f32.mrb[0].mxu0
        %v1062 = vadd.f32 0.0, %v1061
        %v1063 = vpop.f32.mrb[0].mxu0
        %1064 = vmatprep.mubr.bf16.mxu0 0
        %1065 = vmatmul.mubr.bf16.gmra.mrb[0].mxu0 %v1010
        %v1066 = vpop.f32.mrb[0].mxu0
        %v1067 = vadd.f32 0.0, %v1066
        %v1068 = vpop.f32.mrb[0].mxu0
        %v1069 = vpop.f32.mrb[0].mxu0
        %v1070 = vadd.f32 0.0, %v1069
        %v1071 = vpop.f32.mrb[0].mxu0
        %1072 = vmatprep.mubr.bf16.mxu0 0
        %1073 = vmatmul.mubr.bf16.gmra.mrb[0].mxu0 %v1013
        %v1074 = vpop.f32.mrb[0].mxu0
        %v1075 = vadd.f32 0.0, %v1074
        %v1076 = vpop.f32.mrb[0].mxu0
        %v1077 = vpop.f32.mrb[0].mxu0
        %v1078 = vadd.f32 0.0, %v1077
        %v1079 = vpop.f32.mrb[0].mxu0
        %1080 = vmatprep.mubr.bf16.mxu0 0
        %1081 = vmatmul.mubr.bf16.gmra.mrb[0].mxu0 %v1016
        %v1082 = vpop.f32.mrb[0].mxu0
        %v1083 = vadd.f32 0.0, %v1082
        %v1084 = vpop.f32.mrb[0].mxu0
        %v1085 = vpop.f32.mrb[0].mxu0
        %v1086 = vadd.f32 0.0, %v1085
        %v1087 = vpop.f32.mrb[0].mxu0
        %1088 = vmatprep.mubr.bf16.mxu0 0
        %1089 = vmatmul.mubr.bf16.gmra.mrb[0].mxu0 %v1019
        %v1090 = vpop.f32.mrb[0].mxu0
        %v1091 = vadd.f32 0.0, %v1090
        %v1092 = vpop.f32.mrb[0].mxu0
        %v1093 = vpop.f32.mrb[0].mxu0
        %v1094 = vpop.f32.mrb[0].mxu0
        %1095 = vdwg.mxu0
        %v1096 = vadd.f32 %v995, %v1059
        %v1097 = vadd.f32 %v996, %v1062
        %v1098 = vadd.f32 %v997, %v1067
        %v1099 = vadd.f32 %v998, %v1070
        %v1100 = vadd.f32 %v999, %v1075
        %v1101 = vadd.f32 %v1000, %v1078
        %v1102 = vadd.f32 %v1001, %v1083
        %v1103 = vadd.f32 %v1002, %v1086
        %v1104 = vadd.f32 %v1003, %v1091
        %1105 = vst [vmem:[#allocation2] sm:$0xff] %v1096
        %1106 = vst [vmem:[#allocation2 + $0x8] sm:$0xff] %v1097
        %1107 = vst [vmem:[#allocation2 + $0x10] sm:$0xff] %v1098
        %1108 = vst [vmem:[#allocation2 + $0x18] sm:$0xff] %v1099
        %1109 = vst [vmem:[#allocation2 + $0x20] sm:$0xff] %v1100
        %1110 = vst [vmem:[#allocation2 + $0x28] sm:$0xff] %v1101
        %1111 = vst [vmem:[#allocation2 + $0x30] sm:$0xff] %v1102
        %1112 = vst [vmem:[#allocation2 + $0x38] sm:$0xff] %v1103
        %1113 = vst [vmem:[#allocation2 + $0x40] sm:$0xff] %v1104
        %v1114 = vld [vmem:[%s313 + $0x9] sm:$0xff]
        %v1115 = vld [vmem:[%s313 + $0x11] sm:$0xff]
        %v1116 = vld [vmem:[%s313 + $0x19] sm:$0xff]
        %v1117 = vld [vmem:[%s313 + $0x21] sm:$0xff]
        %v1118 = vld [vmem:[%s313 + $0x29] sm:$0xff]
        %v1119 = vld [vmem:[%s313 + $0x31] sm:$0xff]
        %v1120 = vld [vmem:[%s313 + $0x39] sm:$0xff]
        %v1121 = vld [vmem:[%s313 + $0x41] sm:$0xff]
        %v1122 = vld [vmem:[%s313 + $0x49] sm:$0xff]
        %v1123 = vpack.c.bf16 %v1115, %v1114
        %v1124 = vpack.c.bf16 %v1117, %v1116
        %v1125 = vpack.c.bf16 %v1119, %v1118
        %v1126 = vpack.c.bf16 %v1121, %v1120
        %v1127 = vpack.c.bf16 %v1122, %v1122
        %v1128 = vld [vmem:[#allocation2] sm:$0xff]
        %v1129 = vld [vmem:[#allocation2 + $0x8] sm:$0xff]
        %v1130 = vld [vmem:[#allocation2 + $0x10] sm:$0xff]
        %v1131 = vld [vmem:[#allocation2 + $0x18] sm:$0xff]
        %v1132 = vld [vmem:[#allocation2 + $0x20] sm:$0xff]
        %v1133 = vld [vmem:[#allocation2 + $0x28] sm:$0xff]
        %v1134 = vld [vmem:[#allocation2 + $0x30] sm:$0xff]
        %v1135 = vld [vmem:[#allocation2 + $0x38] sm:$0xff]
        %v1136 = vld [vmem:[#allocation2 + $0x40] sm:$0xff]
        %s1137 = scalar_lea.vmem %s1, 14
        %v1138 = vld [vmem:[%s1137] sm:$0x3]
        %v1140 = vsel %vm203, %v1123, 0
        %v1143 = vsel %vm203, %v1124, 0
        %v1146 = vsel %vm203, %v1125, 0
        %v1149 = vsel %vm203, %v1126, 0
        %v1152 = vsel %vm203, %v1127, 0
        %v1155 = vsel %vm219, %v1138, 0
        %1157 = vmatprep.subr.bf16.mxu0 0
        %1158 = vmatpush1.bf16.msra.mxu0 %v1155
        %1159 = vmatprep.subr.bf16.mxu0 0
        %1160 = vmatpush1.bf16.msra.mxu0 0
        %1161 = vmatprep.subr.bf16.mxu0 0
        %1162 = vmatpush1.bf16.msra.mxu0 0
        %1163 = vmatprep.subr.bf16.mxu0 0
        %1164 = vmatpush1.bf16.msra.mxu0 0
        %1165 = vmatprep.subr.bf16.mxu0 0
        %1166 = vmatpush1.bf16.msra.mxu0 0
        %1167 = vmatprep.subr.bf16.mxu0 0
        %1168 = vmatpush1.bf16.msra.mxu0 0
        %1169 = vmatprep.subr.bf16.mxu0 0
        %1170 = vmatpush1.bf16.msra.mxu0 0
        %1171 = vmatprep.subr.bf16.mxu0 0
        %1172 = vmatpush1.bf16.msra.mxu0 0
        %1173 = vmatprep.subr.bf16.mxu0 0
        %1174 = vmatpush1.bf16.msra.mxu0 0
        %1175 = vmatprep.subr.bf16.mxu0 0
        %1176 = vmatpush1.bf16.msra.mxu0 0
        %1177 = vmatprep.subr.bf16.mxu0 0
        %1178 = vmatpush1.bf16.msra.mxu0 0
        %1179 = vmatprep.subr.bf16.mxu0 0
        %1180 = vmatpush1.bf16.msra.mxu0 0
        %1181 = vmatprep.subr.bf16.mxu0 0
        %1182 = vmatpush1.bf16.msra.mxu0 0
        %1183 = vmatprep.subr.bf16.mxu0 0
        %1184 = vmatpush1.bf16.msra.mxu0 0
        %1185 = vmatprep.subr.bf16.mxu0 0
        %1186 = vmatpush1.bf16.msra.mxu0 0
        %1187 = vmatprep.subr.bf16.mxu0 0
        %1188 = vmatpush1.bf16.msra.mxu0 0
        %1189 = vmatprep.mubr.bf16.mxu0 0
        %1190 = vmatmul.mubr.bf16.gmra.mrb[0].mxu0 %v1140
        %v1191 = vpop.f32.mrb[0].mxu0
        %v1192 = vadd.f32 0.0, %v1191
        %v1193 = vpop.f32.mrb[0].mxu0
        %v1194 = vpop.f32.mrb[0].mxu0
        %v1195 = vadd.f32 0.0, %v1194
        %v1196 = vpop.f32.mrb[0].mxu0
        %1197 = vmatprep.mubr.bf16.mxu0 0
        %1198 = vmatmul.mubr.bf16.gmra.mrb[0].mxu0 %v1143
        %v1199 = vpop.f32.mrb[0].mxu0
        %v1200 = vadd.f32 0.0, %v1199
        %v1201 = vpop.f32.mrb[0].mxu0
        %v1202 = vpop.f32.mrb[0].mxu0
        %v1203 = vadd.f32 0.0, %v1202
        %v1204 = vpop.f32.mrb[0].mxu0
        %1205 = vmatprep.mubr.bf16.mxu0 0
        %1206 = vmatmul.mubr.bf16.gmra.mrb[0].mxu0 %v1146
        %v1207 = vpop.f32.mrb[0].mxu0
        %v1208 = vadd.f32 0.0, %v1207
        %v1209 = vpop.f32.mrb[0].mxu0
        %v1210 = vpop.f32.mrb[0].mxu0
        %v1211 = vadd.f32 0.0, %v1210
        %v1212 = vpop.f32.mrb[0].mxu0
        %1213 = vmatprep.mubr.bf16.mxu0 0
        %1214 = vmatmul.mubr.bf16.gmra.mrb[0].mxu0 %v1149
        %v1215 = vpop.f32.mrb[0].mxu0
        %v1216 = vadd.f32 0.0, %v1215
        %v1217 = vpop.f32.mrb[0].mxu0
        %v1218 = vpop.f32.mrb[0].mxu0
        %v1219 = vadd.f32 0.0, %v1218
        %v1220 = vpop.f32.mrb[0].mxu0
        %1221 = vmatprep.mubr.bf16.mxu0 0
        %1222 = vmatmul.mubr.bf16.gmra.mrb[0].mxu0 %v1152
        %v1223 = vpop.f32.mrb[0].mxu0
        %v1224 = vadd.f32 0.0, %v1223
        %v1225 = vpop.f32.mrb[0].mxu0
        %v1226 = vpop.f32.mrb[0].mxu0
        %v1227 = vpop.f32.mrb[0].mxu0
        %1228 = vdwg.mxu0
        %v1229 = vadd.f32 %v1128, %v1192
        %v1230 = vadd.f32 %v1129, %v1195
        %v1231 = vadd.f32 %v1130, %v1200
        %v1232 = vadd.f32 %v1131, %v1203
        %v1233 = vadd.f32 %v1132, %v1208
        %v1234 = vadd.f32 %v1133, %v1211
        %v1235 = vadd.f32 %v1134, %v1216
        %v1236 = vadd.f32 %v1135, %v1219
        %v1237 = vadd.f32 %v1136, %v1224
        %1238 = vst [vmem:[#allocation2] sm:$0xff] %v1229
        %1239 = vst [vmem:[#allocation2 + $0x8] sm:$0xff] %v1230
        %1240 = vst [vmem:[#allocation2 + $0x10] sm:$0xff] %v1231
        %1241 = vst [vmem:[#allocation2 + $0x18] sm:$0xff] %v1232
        %1242 = vst [vmem:[#allocation2 + $0x20] sm:$0xff] %v1233
        %1243 = vst [vmem:[#allocation2 + $0x28] sm:$0xff] %v1234
        %1244 = vst [vmem:[#allocation2 + $0x30] sm:$0xff] %v1235
        %1245 = vst [vmem:[#allocation2 + $0x38] sm:$0xff] %v1236
        %1246 = vst [vmem:[#allocation2 + $0x40] sm:$0xff] %v1237
        %v1247 = vld [vmem:[%s168 + $0xa] sm:$0xff]
        %v1248 = vld [vmem:[%s168 + $0x12] sm:$0xff]
        %v1249 = vld [vmem:[%s168 + $0x1a] sm:$0xff]
        %v1250 = vld [vmem:[%s168 + $0x22] sm:$0xff]
        %v1251 = vld [vmem:[%s168 + $0x2a] sm:$0xff]
        %v1252 = vld [vmem:[%s168 + $0x32] sm:$0xff]
        %v1253 = vld [vmem:[%s168 + $0x3a] sm:$0xff]
        %v1254 = vld [vmem:[%s168 + $0x42] sm:$0xff]
        %v1255 = vld [vmem:[%s168 + $0x4a] sm:$0xff]
        %v1256 = vpack.c.bf16 %v1248, %v1247
        %v1257 = vpack.c.bf16 %v1250, %v1249
        %v1258 = vpack.c.bf16 %v1252, %v1251
        %v1259 = vpack.c.bf16 %v1254, %v1253
        %v1260 = vpack.c.bf16 %v1255, %v1255
        %v1261 = vld [vmem:[#allocation2] sm:$0xff]
        %v1262 = vld [vmem:[#allocation2 + $0x8] sm:$0xff]
        %v1263 = vld [vmem:[#allocation2 + $0x10] sm:$0xff]
        %v1264 = vld [vmem:[#allocation2 + $0x18] sm:$0xff]
        %v1265 = vld [vmem:[#allocation2 + $0x20] sm:$0xff]
        %v1266 = vld [vmem:[#allocation2 + $0x28] sm:$0xff]
        %v1267 = vld [vmem:[#allocation2 + $0x30] sm:$0xff]
        %v1268 = vld [vmem:[#allocation2 + $0x38] sm:$0xff]
        %v1269 = vld [vmem:[#allocation2 + $0x40] sm:$0xff]
        %s1270 = scalar_lea.vmem %s1, 16
        %v1271 = vld [vmem:[%s1270] sm:$0x3]
        %v1273 = vsel %vm203, %v1256, 0
        %v1276 = vsel %vm203, %v1257, 0
        %v1279 = vsel %vm203, %v1258, 0
        %v1282 = vsel %vm203, %v1259, 0
        %v1285 = vsel %vm203, %v1260, 0
        %v1288 = vsel %vm219, %v1271, 0
        %1290 = vmatprep.subr.bf16.mxu0 0
        %1291 = vmatpush1.bf16.msra.mxu0 %v1288
        %1292 = vmatprep.subr.bf16.mxu0 0
        %1293 = vmatpush1.bf16.msra.mxu0 0
        %1294 = vmatprep.subr.bf16.mxu0 0
        %1295 = vmatpush1.bf16.msra.mxu0 0
        %1296 = vmatprep.subr.bf16.mxu0 0
        %1297 = vmatpush1.bf16.msra.mxu0 0
        %1298 = vmatprep.subr.bf16.mxu0 0
        %1299 = vmatpush1.bf16.msra.mxu0 0
        %1300 = vmatprep.subr.bf16.mxu0 0
        %1301 = vmatpush1.bf16.msra.mxu0 0
        %1302 = vmatprep.subr.bf16.mxu0 0
        %1303 = vmatpush1.bf16.msra.mxu0 0
        %1304 = vmatprep.subr.bf16.mxu0 0
        %1305 = vmatpush1.bf16.msra.mxu0 0
        %1306 = vmatprep.subr.bf16.mxu0 0
        %1307 = vmatpush1.bf16.msra.mxu0 0
        %1308 = vmatprep.subr.bf16.mxu0 0
        %1309 = vmatpush1.bf16.msra.mxu0 0
        %1310 = vmatprep.subr.bf16.mxu0 0
        %1311 = vmatpush1.bf16.msra.mxu0 0
        %1312 = vmatprep.subr.bf16.mxu0 0
        %1313 = vmatpush1.bf16.msra.mxu0 0
        %1314 = vmatprep.subr.bf16.mxu0 0
        %1315 = vmatpush1.bf16.msra.mxu0 0
        %1316 = vmatprep.subr.bf16.mxu0 0
        %1317 = vmatpush1.bf16.msra.mxu0 0
        %1318 = vmatprep.subr.bf16.mxu0 0
        %1319 = vmatpush1.bf16.msra.mxu0 0
        %1320 = vmatprep.subr.bf16.mxu0 0
        %1321 = vmatpush1.bf16.msra.mxu0 0
        %1322 = vmatprep.mubr.bf16.mxu0 0
        %1323 = vmatmul.mubr.bf16.gmra.mrb[0].mxu0 %v1273
        %v1324 = vpop.f32.mrb[0].mxu0
        %v1325 = vadd.f32 0.0, %v1324
        %v1326 = vpop.f32.mrb[0].mxu0
        %v1327 = vpop.f32.mrb[0].mxu0
        %v1328 = vadd.f32 0.0, %v1327
        %v1329 = vpop.f32.mrb[0].mxu0
        %1330 = vmatprep.mubr.bf16.mxu0 0
        %1331 = vmatmul.mubr.bf16.gmra.mrb[0].mxu0 %v1276
        %v1332 = vpop.f32.mrb[0].mxu0
        %v1333 = vadd.f32 0.0, %v1332
        %v1334 = vpop.f32.mrb[0].mxu0
        %v1335 = vpop.f32.mrb[0].mxu0
        %v1336 = vadd.f32 0.0, %v1335
        %v1337 = vpop.f32.mrb[0].mxu0
        %1338 = vmatprep.mubr.bf16.mxu0 0
        %1339 = vmatmul.mubr.bf16.gmra.mrb[0].mxu0 %v1279
        %v1340 = vpop.f32.mrb[0].mxu0
        %v1341 = vadd.f32 0.0, %v1340
        %v1342 = vpop.f32.mrb[0].mxu0
        %v1343 = vpop.f32.mrb[0].mxu0
        %v1344 = vadd.f32 0.0, %v1343
        %v1345 = vpop.f32.mrb[0].mxu0
        %1346 = vmatprep.mubr.bf16.mxu0 0
        %1347 = vmatmul.mubr.bf16.gmra.mrb[0].mxu0 %v1282
        %v1348 = vpop.f32.mrb[0].mxu0
        %v1349 = vadd.f32 0.0, %v1348
        %v1350 = vpop.f32.mrb[0].mxu0
        %v1351 = vpop.f32.mrb[0].mxu0
        %v1352 = vadd.f32 0.0, %v1351
        %v1353 = vpop.f32.mrb[0].mxu0
        %1354 = vmatprep.mubr.bf16.mxu0 0
        %1355 = vmatmul.mubr.bf16.gmra.mrb[0].mxu0 %v1285
        %v1356 = vpop.f32.mrb[0].mxu0
        %v1357 = vadd.f32 0.0, %v1356
        %v1358 = vpop.f32.mrb[0].mxu0
        %v1359 = vpop.f32.mrb[0].mxu0
        %v1360 = vpop.f32.mrb[0].mxu0
        %1361 = vdwg.mxu0
        %v1362 = vadd.f32 %v1261, %v1325
        %v1363 = vadd.f32 %v1262, %v1328
        %v1364 = vadd.f32 %v1263, %v1333
        %v1365 = vadd.f32 %v1264, %v1336
        %v1366 = vadd.f32 %v1265, %v1341
        %v1367 = vadd.f32 %v1266, %v1344
        %v1368 = vadd.f32 %v1267, %v1349
        %v1369 = vadd.f32 %v1268, %v1352
        %v1370 = vadd.f32 %v1269, %v1357
        %1371 = vst [vmem:[#allocation2] sm:$0xff] %v1362
        %1372 = vst [vmem:[#allocation2 + $0x8] sm:$0xff] %v1363
        %1373 = vst [vmem:[#allocation2 + $0x10] sm:$0xff] %v1364
        %1374 = vst [vmem:[#allocation2 + $0x18] sm:$0xff] %v1365
        %1375 = vst [vmem:[#allocation2 + $0x20] sm:$0xff] %v1366
        %1376 = vst [vmem:[#allocation2 + $0x28] sm:$0xff] %v1367
        %1377 = vst [vmem:[#allocation2 + $0x30] sm:$0xff] %v1368
        %1378 = vst [vmem:[#allocation2 + $0x38] sm:$0xff] %v1369
        %1379 = vst [vmem:[#allocation2 + $0x40] sm:$0xff] %v1370
        %v1380 = vld [vmem:[#allocation2] sm:$0xff]
        %v1381 = vld [vmem:[#allocation2 + $0x8] sm:$0xff]
        %v1382 = vld [vmem:[#allocation2 + $0x10] sm:$0xff]
        %v1383 = vld [vmem:[#allocation2 + $0x18] sm:$0xff]
        %v1384 = vld [vmem:[#allocation2 + $0x20] sm:$0xff]
        %v1385 = vld [vmem:[#allocation2 + $0x28] sm:$0xff]
        %v1386 = vld [vmem:[#allocation2 + $0x30] sm:$0xff]
        %v1387 = vld [vmem:[#allocation2 + $0x38] sm:$0xff]
        %v1388 = vld [vmem:[#allocation2 + $0x40] sm:$0xff]
        %v1389 = vld [vmem:[%s2] sm:$0x1]
        %v1391 = vlaneseq
        %v1392 = vshrl.u32 %v1391, 7
        %v1393 = vsub.s32 0, %v1392
        %v1394 = vrot.slane %v1389, %v1393
        %v1396 = vadd.f32 %v1380, %v1394
        %v1397 = vadd.f32 %v1381, %v1394
        %v1398 = vadd.f32 %v1382, %v1394
        %v1399 = vadd.f32 %v1383, %v1394
        %v1400 = vadd.f32 %v1384, %v1394
        %v1401 = vadd.f32 %v1385, %v1394
        %v1402 = vadd.f32 %v1386, %v1394
        %v1403 = vadd.f32 %v1387, %v1394
        %v1404 = vadd.f32 %v1388, %v1394
        %1405 = vst [vmem:[%s163] sm:$0xff] %v1396
        %1406 = vst [vmem:[%s163 + $0x8] sm:$0xff] %v1397
        %1407 = vst [vmem:[%s163 + $0x10] sm:$0xff] %v1398
        %1408 = vst [vmem:[%s163 + $0x18] sm:$0xff] %v1399
        %1409 = vst [vmem:[%s163 + $0x20] sm:$0xff] %v1400
        %1410 = vst [vmem:[%s163 + $0x28] sm:$0xff] %v1401
        %1411 = vst [vmem:[%s163 + $0x30] sm:$0xff] %v1402
        %1412 = vst [vmem:[%s163 + $0x38] sm:$0xff] %v1403
        %1413 = vst [vmem:[%s163 + $0x40] sm:$0xff] %v1404
        %s1414 = sand.u32 %s93, 1
        %s1415 = scalar_lea.sflag [#allocation4], %s1414
        %s1416 = sand.u32 %s93, 1
        %s1417 = smul.addr %s1416, 72
        %s1418 = scalar_lea.vmem [#allocation3], %s1417
        // Predicated region
        $region33: #{tpu_custom_call.1} parent=31 // pred_check
          %p1419 = pneg %p103
        $region34: #{tpu_custom_call.1} parent=31 // pred_check_branch
          %1421 = sbr.rel (%p1419) target = $region36
        $region35: #{tpu_custom_call.1} parent=31 // pred_region
          %s1423 = ssub.s32 1152, 1152
          %1424 = vsyncadd %s1415, %s1423
          %s1425 = smul.addr %s17, 9
          %s1426 = smul.addr %s1425, 128
          %s1427 = scalar_lea.hbm %s3, %s1426
          %s1428 = sshll.u32 %s1418, 4
          %s1429 = int_to_ptr.vmem [resolvable:$true] %s1428
          %1434 = dma.vmem_to_hbm [thread:$0]  %s1429, 1152, %s1427, %s1415, 128, 128, 8
        $region36: #{tpu_custom_call.1} parent=31 // pred_fallthru
          _
      $region32: #{tpu_custom_call.1} parent=5 // pred_fallthru
        _
      %p1435 = scmp.le.s32.totalorder 2, %s12
      // Predicated region
      $region37: #{tpu_custom_call.1} parent=5 // pred_check
        %p1436 = pneg %p1435
      $region38: #{tpu_custom_call.1} parent=5 // pred_check_branch
        %1438 = sbr.rel (%p1436) target = $region40
      $region39: #{tpu_custom_call.1} parent=5 // pred_region
        %s1439 = ssub.s32 %s12, 2
        // Predicated region
        $region41: #{tpu_custom_call.1} parent=39 // pred_check
          %p1440 = pneg %p109
        $region42: #{tpu_custom_call.1} parent=39 // pred_check_branch
          %1442 = sbr.rel (%p1440) target = $region44
        $region43: #{tpu_custom_call.1} parent=39 // pred_region
          %s1443 = sand.u32 %s94, 1
          %s1444 = scalar_lea.sflag [#allocation4], %s1443
          %s1445 = sand.u32 %s94, 1
          %s1446 = smul.addr %s1445, 72
          %s1447 = scalar_lea.vmem [#allocation3], %s1446
          %1448 = dma.done %s1444, 1152
        $region44: #{tpu_custom_call.1} parent=39 // pred_fallthru
          _
      $region40: #{tpu_custom_call.1} parent=5 // pred_fallthru
        _
    $region6: #{tpu_custom_call.1} parent=1 // loop_footer
      %s16 = sadd.s32 1, %s12
    $region7: #{tpu_custom_call.1} parent=1 // loop_footer_branch
      %11 = sbr.rel target = $region3
    $region8: #{tpu_custom_call.1} parent=1 // loop_exit
      _
    %1449 = vsyncpa [#allocation4], 1
    %s1450 = scalar_lea.sflag [#allocation4], 1
    %1451 = vsyncpa %s1450, 1

</llo_original>
